<compile_context>
chip_gen: v6e
topology: v6e:2x2x1
jax: 0.10.0
libtpu: 0.0.40
codegen_flags: <defaults>
</compile_context>

<pallas_src>
import functools

import jax
import jax.numpy as jnp
from jax.experimental import pallas as pl
from jax.experimental.pallas import tpu as pltpu


# ----------------------------- in-kernel helpers -----------------------------

_SELU_ALPHA = 1.6732632423543772848170429916717
_SELU_LAMBDA = 1.0507009873554804934193349852946


def _selu(x):
    return _SELU_LAMBDA * jnp.where(x > 0, x, _SELU_ALPHA * (jnp.exp(x) - 1.0))


def _layer_norm(x, w, b, eps=1e-5):
    # Single-pass statistics: var = E[x^2] - mean^2 (one elementwise pass, two reduces).
    mean = jnp.mean(x, axis=-1, keepdims=True)
    mean_sq = jnp.mean(x * x, axis=-1, keepdims=True)
    var = mean_sq - mean * mean
    return (x - mean) * jax.lax.rsqrt(var + eps) * w + b


# --------------------------------- kernel ------------------------------------

def tst_encoder_layer_kernel(src_ref, wqkv_ref, bqkv_ref, wo_ref, bo_ref,
                             ln1w_ref, ln1b_ref, ln2w_ref, ln2b_ref,
                             out_ref, *, bs, seq, d_model, n_heads, d_head):
    D, L = d_model, seq
    BH = bs * n_heads

    # Flatten (bs, L, D) -> (bs*L, D): row-wise work (projections, SELU, LN) is dense.
    x = src_ref[...].reshape(bs * L, D)                                 # f32

    # ---- fused QKV projection: one MXU pass, bf16 operands, f32 accumulate ----
    qkv = jnp.dot(x.astype(jnp.bfloat16), wqkv_ref[...],
                  preferred_element_type=jnp.float32) + bqkv_ref[...]   # [bs*L, 3D]

    # ---- head-major layout: one batched transpose, then free leading-dim splits ----
    qkv_t = jnp.swapaxes(qkv.reshape(bs, L, 3 * D), 1, 2)               # [bs, 3D, L]
    q_t = qkv_t[:, 0 * D:1 * D, :].reshape(BH, d_head, L)               # [BH, d, L]
    k_t = qkv_t[:, 1 * D:2 * D, :].reshape(BH, d_head, L)
    v_t = qkv_t[:, 2 * D:3 * D, :].reshape(BH, d_head, L)

    q = jnp.swapaxes(q_t, 1, 2).astype(jnp.bfloat16)                    # [BH, L, d]
    k = k_t.astype(jnp.bfloat16)                                        # [BH, d, L]
    v = v_t.astype(jnp.bfloat16)                                        # [BH, d, L]

    # ---- scaled dot-product attention, all heads in one batched matmul ----
    # d_k**-0.5 is already folded into W_Q / b_Q offline.
    s = jnp.einsum("nqd,ndk->nqk", q, k,
                   preferred_element_type=jnp.float32)                  # [BH, L, L] f32
    m = jnp.max(s, axis=-1, keepdims=True)
    e = jnp.exp(s - m)
    denom = jnp.sum(e, axis=-1, keepdims=True)
    a = e * pl.reciprocal(denom, approx=True)                           # softmax (EUP)

    # context^T per head: [BH, d, L]; concatenating heads is a free reshape here.
    ctx_t = jnp.einsum("ndk,nqk->ndq", v, a.astype(jnp.bfloat16),
                       preferred_element_type=jnp.float32)
    ctx = jnp.swapaxes(ctx_t.reshape(bs, D, L), 1, 2).reshape(bs * L, D)

    # ---- output projection (to_out), SELU, residual, two LayerNorms ----
    proj = jnp.dot(ctx.astype(jnp.bfloat16), wo_ref[...],
                   preferred_element_type=jnp.float32) + bo_ref[...]

    y = x + _selu(proj)                                                 # dropouts = id
    y = _layer_norm(y, ln1w_ref[...], ln1b_ref[...])                    # norm_attn
    y = _layer_norm(y, ln2w_ref[...], ln2b_ref[...])                    # norm_ffn

    out_ref[...] = y.reshape(bs, L, D).astype(out_ref.dtype)


# ---------------------- offline weight preparation ----------------------------

def prepare_params(params, d_model, n_heads):
    """Done once, offline: fuse QKV, fold the attention scale into W_Q/b_Q,
    store matmul weights in bf16 (MXU operands); biases / LN params stay f32."""
    d_head = d_model // n_heads
    scale = float(d_head) ** -0.5
    wqkv = jnp.concatenate([params["wq"] * scale, params["wk"], params["wv"]], axis=1)
    bqkv = jnp.concatenate([params["bq"] * scale, params["bk"], params["bv"]], axis=1)
    return dict(
        wqkv=wqkv.astype(jnp.bfloat16),
        bqkv=bqkv.astype(jnp.float32),
        wo=params["wo"].astype(jnp.bfloat16),
        bo=params["bo"].astype(jnp.float32),
        ln1_w=params["ln1_w"], ln1_b=params["ln1_b"],
        ln2_w=params["ln2_w"], ln2_b=params["ln2_b"],
    )


# --------------------------------- wrapper -----------------------------------

def tst_encoder_layer(src, prep, *, n_heads):
    bs, L, D = src.shape
    d_head = D // n_heads

    kernel = functools.partial(
        tst_encoder_layer_kernel,
        bs=bs, seq=L, d_model=D, n_heads=n_heads, d_head=d_head)

    args = (src, prep["wqkv"], prep["bqkv"], prep["wo"], prep["bo"],
            prep["ln1_w"], prep["ln1_b"], prep["ln2_w"], prep["ln2_b"])

    vmem_spec = pl.BlockSpec(memory_space=pltpu.MemorySpace.VMEM)
    return pl.pallas_call(
        kernel,
        out_shape=jax.ShapeDtypeStruct((bs, L, D), src.dtype),
        in_specs=[vmem_spec] * len(args),
        out_specs=vmem_spec,
        compiler_params=pltpu.CompilerParams(
            vmem_limit_bytes=32 * 1024 * 1024),
    )(*args)


# ----------------------------- pure-JAX reference ----------------------------

def reference(src, params, n_heads):
    bs, L, D = src.shape
    d_k = D // n_heads
    scale = float(d_k) ** -0.5
    q = src @ params["wq"] + params["bq"]
    k = src @ params["wk"] + params["bk"]
    v = src @ params["wv"] + params["bv"]
    q = q.reshape(bs, L, n_heads, d_k).transpose(0, 2, 1, 3)
    k = k.reshape(bs, L, n_heads, d_k).transpose(0, 2, 1, 3)
    v = v.reshape(bs, L, n_heads, d_k).transpose(0, 2, 1, 3)
    s = jnp.einsum("bhqd,bhkd->bhqk", q, k) * scale
    a = jax.nn.softmax(s, axis=-1)
    o = jnp.einsum("bhqk,bhkd->bhqd", a, v)
    o = o.transpose(0, 2, 1, 3).reshape(bs, L, D)
    o = o @ params["wo"] + params["bo"]
    y = src + jax.nn.selu(o)

    def ln(z, w, b):
        mu = jnp.mean(z, -1, keepdims=True)
        var = jnp.mean((z - mu) ** 2, -1, keepdims=True)
        return (z - mu) / jnp.sqrt(var + 1e-5) * w + b

    y = ln(y, params["ln1_w"], params["ln1_b"])
    y = ln(y, params["ln2_w"], params["ln2_b"])
    return y


# ----------------------------------- main ------------------------------------

def init_params(key, d_model):
    """Deterministic synthetic parameters (PyTorch-Linear-like uniform init),
    weights stored pre-transposed as [in_features, out_features]."""
    ks = jax.random.split(key, 8)
    bound = 1.0 / (d_model ** 0.5)

    def u(k, shape):
        return jax.random.uniform(k, shape, jnp.float32, -bound, bound)

    return dict(
        wq=u(ks[0], (d_model, d_model)), bq=u(ks[1], (1, d_model)),
        wk=u(ks[2], (d_model, d_model)), bk=u(ks[3], (1, d_model)),
        wv=u(ks[4], (d_model, d_model)), bv=u(ks[5], (1, d_model)),
        wo=u(ks[6], (d_model, d_model)), bo=u(ks[7], (1, d_model)),
        ln1_w=jnp.ones((1, d_model), jnp.float32),
        ln1_b=jnp.zeros((1, d_model), jnp.float32),
        ln2_w=jnp.ones((1, d_model), jnp.float32),
        ln2_b=jnp.zeros((1, d_model), jnp.float32),
    )


if __name__ == "__main__":
    bs, q_len, d_model, n_heads = 2, 8, 32, 4

    key = jax.random.PRNGKey(0)
    k_src, k_par = jax.random.split(key)
    src = jax.random.normal(k_src, (bs, q_len, d_model), jnp.float32)
    params = init_params(k_par, d_model)

    prep = prepare_params(params, d_model, n_heads)          # offline weight prep
    out = tst_encoder_layer(src, prep, n_heads=n_heads)
    out = jax.block_until_ready(out)

    ref = reference(src, params, n_heads)                    # full-f32 reference
    assert out.shape == (bs, q_len, d_model)
    # Loose tolerance accounts for bf16 MXU operands + approx EUP reciprocal.
    assert jnp.allclose(out, ref, rtol=5e-2, atol=5e-2), "mismatch vs reference"

    print("KERNEL_OK")
</pallas_src>

<mosaic_0001>
module attributes {stable_mosaic.version = 11 : i64} {
  func.func @tst_encoder_layer_kernel(%arg0: memref<2x8x32xf32, #tpu.memory_space<vmem>>, %arg1: memref<32x96xbf16, #tpu.memory_space<vmem>>, %arg2: memref<1x96xf32, #tpu.memory_space<vmem>>, %arg3: memref<32x32xbf16, #tpu.memory_space<vmem>>, %arg4: memref<1x32xf32, #tpu.memory_space<vmem>>, %arg5: memref<1x32xf32, #tpu.memory_space<vmem>>, %arg6: memref<1x32xf32, #tpu.memory_space<vmem>>, %arg7: memref<1x32xf32, #tpu.memory_space<vmem>>, %arg8: memref<1x32xf32, #tpu.memory_space<vmem>>, %arg9: memref<2x8x32xf32, #tpu.memory_space<vmem>>) attributes {dimension_semantics = [], scalar_prefetch = 0 : i64, scratch_operands = 0 : i64, tpu.core_type = #tpu.core_type<tc>} {
    %c0 = arith.constant 0 : index
    %c0_0 = arith.constant 0 : index
    %c0_1 = arith.constant 0 : index
    %0 = vector.load %arg0[%c0, %c0_0, %c0_1] : memref<2x8x32xf32, #tpu.memory_space<vmem>>, vector<2x8x32xf32>
    %1 = vector.shape_cast %0 : vector<2x8x32xf32> to vector<16x32xf32>
    %2 = arith.truncf %1 : vector<16x32xf32> to vector<16x32xbf16>
    %c0_2 = arith.constant 0 : index
    %c0_3 = arith.constant 0 : index
    %3 = vector.load %arg1[%c0_2, %c0_3] : memref<32x96xbf16, #tpu.memory_space<vmem>>, vector<32x96xbf16>
    %cst = arith.constant dense<0.000000e+00> : vector<16x96xf32>
    %4 = tpu.matmul %2, %3, %cst {dimension_numbers = #tpu.dot_dimension_numbers<[1], [0], [0], [1], [0, 0, 1, 1], [], []>} : vector<16x32xbf16>, vector<32x96xbf16>, vector<16x96xf32> -> vector<16x96xf32>
    %c0_4 = arith.constant 0 : index
    %c0_5 = arith.constant 0 : index
    %5 = vector.load %arg2[%c0_4, %c0_5] : memref<1x96xf32, #tpu.memory_space<vmem>>, vector<1x96xf32>
    %6 = vector.broadcast %5 : vector<1x96xf32> to vector<16x96xf32>
    %7 = arith.addf %4, %6 : vector<16x96xf32>
    %8 = vector.shape_cast %7 : vector<16x96xf32> to vector<2x8x96xf32>
    %9 = tpu.transpose %8, [0, 2, 1] : vector<2x8x96xf32> -> vector<2x96x8xf32>
    %10 = vector.extract_strided_slice %9 {offsets = [0, 0, 0], sizes = [2, 32, 8], strides = [1, 1, 1]} : vector<2x96x8xf32> to vector<2x32x8xf32>
    %11 = vector.shape_cast %10 : vector<2x32x8xf32> to vector<8x8x8xf32>
    %12 = vector.extract_strided_slice %9 {offsets = [0, 32, 0], sizes = [2, 32, 8], strides = [1, 1, 1]} : vector<2x96x8xf32> to vector<2x32x8xf32>
    %13 = vector.shape_cast %12 : vector<2x32x8xf32> to vector<8x8x8xf32>
    %14 = vector.extract_strided_slice %9 {offsets = [0, 64, 0], sizes = [2, 32, 8], strides = [1, 1, 1]} : vector<2x96x8xf32> to vector<2x32x8xf32>
    %15 = vector.shape_cast %14 : vector<2x32x8xf32> to vector<8x8x8xf32>
    %16 = tpu.transpose %11, [0, 2, 1] : vector<8x8x8xf32> -> vector<8x8x8xf32>
    %17 = arith.truncf %16 : vector<8x8x8xf32> to vector<8x8x8xbf16>
    %18 = arith.truncf %13 : vector<8x8x8xf32> to vector<8x8x8xbf16>
    %19 = arith.truncf %15 : vector<8x8x8xf32> to vector<8x8x8xbf16>
    "tpu.trace_start"() <{level = 10 : i32, message = "nqd,ndk->nqk"}> : () -> ()
    %cst_6 = arith.constant dense<0.000000e+00> : vector<8x8x8xf32>
    %20 = tpu.matmul %17, %18, %cst_6 {dimension_numbers = #tpu.dot_dimension_numbers<[2], [1], [1], [2], [0, 0, 0, 1, 1, 2], [0], [0]>} : vector<8x8x8xbf16>, vector<8x8x8xbf16>, vector<8x8x8xf32> -> vector<8x8x8xf32>
    "tpu.trace_stop"() : () -> ()
    %cst_7 = arith.constant dense<0xFF800000> : vector<8x8xf32>
    %21 = vector.multi_reduction <maximumf>, %20, %cst_7 [2] : vector<8x8x8xf32> to vector<8x8xf32>
    %22 = vector.shape_cast %21 : vector<8x8xf32> to vector<8x8x1xf32>
    %23 = vector.broadcast %22 : vector<8x8x1xf32> to vector<8x8x8xf32>
    %24 = arith.subf %20, %23 : vector<8x8x8xf32>
    %25 = math.exp %24 : vector<8x8x8xf32>
    %cst_8 = arith.constant dense<0.000000e+00> : vector<8x8xf32>
    %26 = vector.multi_reduction <add>, %25, %cst_8 [2] : vector<8x8x8xf32> to vector<8x8xf32>
    %27 = vector.shape_cast %26 : vector<8x8xf32> to vector<8x8x1xf32>
    %28 = tpu.reciprocal %27 {approx = true} : vector<8x8x1xf32> -> vector<8x8x1xf32>
    %29 = vector.broadcast %28 : vector<8x8x1xf32> to vector<8x8x8xf32>
    %30 = arith.mulf %25, %29 : vector<8x8x8xf32>
    %31 = arith.truncf %30 : vector<8x8x8xf32> to vector<8x8x8xbf16>
    "tpu.trace_start"() <{level = 10 : i32, message = "ndk,nqk->ndq"}> : () -> ()
    %cst_9 = arith.constant dense<0.000000e+00> : vector<8x8x8xf32>
    %32 = tpu.matmul %19, %31, %cst_9 {dimension_numbers = #tpu.dot_dimension_numbers<[2], [2], [1], [1], [0, 0, 0, 1, 1, 1], [0], [0]>} : vector<8x8x8xbf16>, vector<8x8x8xbf16>, vector<8x8x8xf32> -> vector<8x8x8xf32>
    "tpu.trace_stop"() : () -> ()
    %33 = vector.shape_cast %32 : vector<8x8x8xf32> to vector<2x32x8xf32>
    %34 = tpu.transpose %33, [0, 2, 1] : vector<2x32x8xf32> -> vector<2x8x32xf32>
    %35 = vector.shape_cast %34 : vector<2x8x32xf32> to vector<16x32xf32>
    %36 = arith.truncf %35 : vector<16x32xf32> to vector<16x32xbf16>
    %c0_10 = arith.constant 0 : index
    %c0_11 = arith.constant 0 : index
    %37 = vector.load %arg3[%c0_10, %c0_11] : memref<32x32xbf16, #tpu.memory_space<vmem>>, vector<32x32xbf16>
    %cst_12 = arith.constant dense<0.000000e+00> : vector<16x32xf32>
    %38 = tpu.matmul %36, %37, %cst_12 {dimension_numbers = #tpu.dot_dimension_numbers<[1], [0], [0], [1], [0, 0, 1, 1], [], []>} : vector<16x32xbf16>, vector<32x32xbf16>, vector<16x32xf32> -> vector<16x32xf32>
    %c0_13 = arith.constant 0 : index
    %c0_14 = arith.constant 0 : index
    %39 = vector.load %arg4[%c0_13, %c0_14] : memref<1x32xf32, #tpu.memory_space<vmem>>, vector<1x32xf32>
    %40 = vector.broadcast %39 : vector<1x32xf32> to vector<16x32xf32>
    %41 = arith.addf %38, %40 : vector<16x32xf32>
    %cst_15 = arith.constant 0.000000e+00 : f32
    %42 = vector.broadcast %cst_15 : f32 to vector<16x32xf32>
    %43 = arith.cmpf ogt, %41, %42 : vector<16x32xf32>
    %44 = math.exp %41 : vector<16x32xf32>
    %cst_16 = arith.constant 1.000000e+00 : f32
    %45 = vector.broadcast %cst_16 : f32 to vector<16x32xf32>
    %46 = arith.subf %44, %45 : vector<16x32xf32>
    %cst_17 = arith.constant 1.67326319 : f32
    %47 = vector.broadcast %cst_17 : f32 to vector<16x32xf32>
    %48 = arith.mulf %47, %46 : vector<16x32xf32>
    %49 = arith.select %43, %41, %48 : vector<16x32xi1>, vector<16x32xf32>
    %cst_18 = arith.constant 1.05070102 : f32
    %50 = vector.broadcast %cst_18 : f32 to vector<16x32xf32>
    %51 = arith.mulf %50, %49 : vector<16x32xf32>
    %52 = arith.addf %1, %51 : vector<16x32xf32>
    %c0_19 = arith.constant 0 : index
    %c0_20 = arith.constant 0 : index
    %53 = vector.load %arg5[%c0_19, %c0_20] : memref<1x32xf32, #tpu.memory_space<vmem>>, vector<1x32xf32>
    %c0_21 = arith.constant 0 : index
    %c0_22 = arith.constant 0 : index
    %54 = vector.load %arg6[%c0_21, %c0_22] : memref<1x32xf32, #tpu.memory_space<vmem>>, vector<1x32xf32>
    %cst_23 = arith.constant dense<0.000000e+00> : vector<16xf32>
    %55 = vector.multi_reduction <add>, %52, %cst_23 [1] : vector<16x32xf32> to vector<16xf32>
    %56 = vector.shape_cast %55 : vector<16xf32> to vector<16x1xf32>
    %cst_24 = arith.constant 3.200000e+01 : f32
    %57 = vector.broadcast %cst_24 : f32 to vector<16x1xf32>
    %58 = arith.divf %56, %57 : vector<16x1xf32>
    %59 = arith.mulf %52, %52 : vector<16x32xf32>
    %cst_25 = arith.constant dense<0.000000e+00> : vector<16xf32>
    %60 = vector.multi_reduction <add>, %59, %cst_25 [1] : vector<16x32xf32> to vector<16xf32>
    %61 = vector.shape_cast %60 : vector<16xf32> to vector<16x1xf32>
    %cst_26 = arith.constant 3.200000e+01 : f32
    %62 = vector.broadcast %cst_26 : f32 to vector<16x1xf32>
    %63 = arith.divf %61, %62 : vector<16x1xf32>
    %64 = arith.mulf %58, %58 : vector<16x1xf32>
    %65 = arith.subf %63, %64 : vector<16x1xf32>
    %66 = vector.broadcast %58 : vector<16x1xf32> to vector<16x32xf32>
    %67 = arith.subf %52, %66 : vector<16x32xf32>
    %cst_27 = arith.constant 9.99999974E-6 : f32
    %68 = vector.broadcast %cst_27 : f32 to vector<16x1xf32>
    %69 = arith.addf %65, %68 : vector<16x1xf32>
    %70 = math.rsqrt %69 : vector<16x1xf32>
    %71 = vector.broadcast %70 : vector<16x1xf32> to vector<16x32xf32>
    %72 = arith.mulf %67, %71 : vector<16x32xf32>
    %73 = vector.broadcast %53 : vector<1x32xf32> to vector<16x32xf32>
    %74 = arith.mulf %72, %73 : vector<16x32xf32>
    %75 = vector.broadcast %54 : vector<1x32xf32> to vector<16x32xf32>
    %76 = arith.addf %74, %75 : vector<16x32xf32>
    %c0_28 = arith.constant 0 : index
    %c0_29 = arith.constant 0 : index
    %77 = vector.load %arg7[%c0_28, %c0_29] : memref<1x32xf32, #tpu.memory_space<vmem>>, vector<1x32xf32>
    %c0_30 = arith.constant 0 : index
    %c0_31 = arith.constant 0 : index
    %78 = vector.load %arg8[%c0_30, %c0_31] : memref<1x32xf32, #tpu.memory_space<vmem>>, vector<1x32xf32>
    %cst_32 = arith.constant dense<0.000000e+00> : vector<16xf32>
    %79 = vector.multi_reduction <add>, %76, %cst_32 [1] : vector<16x32xf32> to vector<16xf32>
    %80 = vector.shape_cast %79 : vector<16xf32> to vector<16x1xf32>
    %cst_33 = arith.constant 3.200000e+01 : f32
    %81 = vector.broadcast %cst_33 : f32 to vector<16x1xf32>
    %82 = arith.divf %80, %81 : vector<16x1xf32>
    %83 = arith.mulf %76, %76 : vector<16x32xf32>
    %cst_34 = arith.constant dense<0.000000e+00> : vector<16xf32>
    %84 = vector.multi_reduction <add>, %83, %cst_34 [1] : vector<16x32xf32> to vector<16xf32>
    %85 = vector.shape_cast %84 : vector<16xf32> to vector<16x1xf32>
    %cst_35 = arith.constant 3.200000e+01 : f32
    %86 = vector.broadcast %cst_35 : f32 to vector<16x1xf32>
    %87 = arith.divf %85, %86 : vector<16x1xf32>
    %88 = arith.mulf %82, %82 : vector<16x1xf32>
    %89 = arith.subf %87, %88 : vector<16x1xf32>
    %90 = vector.broadcast %82 : vector<16x1xf32> to vector<16x32xf32>
    %91 = arith.subf %76, %90 : vector<16x32xf32>
    %cst_36 = arith.constant 9.99999974E-6 : f32
    %92 = vector.broadcast %cst_36 : f32 to vector<16x1xf32>
    %93 = arith.addf %89, %92 : vector<16x1xf32>
    %94 = math.rsqrt %93 : vector<16x1xf32>
    %95 = vector.broadcast %94 : vector<16x1xf32> to vector<16x32xf32>
    %96 = arith.mulf %91, %95 : vector<16x32xf32>
    %97 = vector.broadcast %77 : vector<1x32xf32> to vector<16x32xf32>
    %98 = arith.mulf %96, %97 : vector<16x32xf32>
    %99 = vector.broadcast %78 : vector<1x32xf32> to vector<16x32xf32>
    %100 = arith.addf %98, %99 : vector<16x32xf32>
    %101 = vector.shape_cast %100 : vector<16x32xf32> to vector<2x8x32xf32>
    %c0_37 = arith.constant 0 : index
    %c0_38 = arith.constant 0 : index
    %c0_39 = arith.constant 0 : index
    %102 = vector.load %arg9[%c0_37, %c0_38, %c0_39] : memref<2x8x32xf32, #tpu.memory_space<vmem>>, vector<2x8x32xf32>
    tpu.vector_store %arg9[%c0_37, %c0_38, %c0_39], %101 {strides = array<i32>} : memref<2x8x32xf32, #tpu.memory_space<vmem>>, vector<2x8x32xf32>,
    return
  }
}

</mosaic_0001>

<llo_original>
// kernel: tpu_custom_call.1
$region0: #{tpu_custom_call.1}
  #allocation0 [shape = 'u32[]', space=smem, size = 0x4, offset = 0x4, fixed_abs, tag = 'smem constant byte address 0x4 - core index']
  #allocation1 [shape = 'u32[144,128]{1,0:T(1,128)}', space=vmem, size = 0x12000, scoped, tag = 'internal scratch']
  %s0 = inlined_call_operand.hbm [shape: f32[2,8,32], index: 0, kind: input, shape index: {}]
  %s1 = inlined_call_operand.hbm [shape: bf16[32,96], index: 1, kind: input, shape index: {}]
  %s2 = inlined_call_operand.vmem [shape: f32[1,96], index: 2, kind: input, shape index: {}]
  %s3 = inlined_call_operand.hbm [shape: bf16[32,32], index: 3, kind: input, shape index: {}]
  %s4 = inlined_call_operand.vmem [shape: f32[1,32], index: 4, kind: input, shape index: {}]
  %s5 = inlined_call_operand.vmem [shape: f32[1,32], index: 5, kind: input, shape index: {}]
  %s6 = inlined_call_operand.vmem [shape: f32[1,32], index: 6, kind: input, shape index: {}]
  %s7 = inlined_call_operand.vmem [shape: f32[1,32], index: 7, kind: input, shape index: {}]
  %s8 = inlined_call_operand.vmem [shape: f32[1,32], index: 8, kind: input, shape index: {}]
  %s9 = inlined_call_operand.hbm [shape: f32[2,8,32], index: 9, kind: output, shape index: {}]
  %s10 = sld [smem:[#allocation0]]
  $region58: #{tpu_custom_call.1} parent=0
    _
  %s12 = ssub.s32 1, %s10
  %s13 = scalar_select 0, %s12, %s10
  $region1: #{tpu_custom_call.1} parent=0
    #allocation2 [shape = 'u8[8192]{0}', space=vmem, size = 0x2000, scoped, tag = 'input window, operand 0, single buffered']
    #allocation3 [shape = 's32[1]{0}', space=sflag, size = 0x4, scoped, tag = 'scoped memory for tpu_custom_call.1']
    #allocation4 [shape = 's32[1]{0}', space=sflag, size = 0x4, scoped, tag = 'scoped memory for tpu_custom_call.1']
    #allocation5 [shape = 'u8[8192]{0}', space=vmem, size = 0x2000, scoped, tag = 'input window, operand 1, single buffered']
    #allocation6 [shape = 's32[1]{0}', space=sflag, size = 0x4, scoped, tag = 'scoped memory for tpu_custom_call.1']
    #allocation7 [shape = 'u8[8192]{0}', space=vmem, size = 0x2000, scoped, tag = 'input window, operand 3, single buffered']
    #allocation8 [shape = 'u8[8192]{0}', space=vmem, size = 0x2000, scoped, tag = 'output window, operand 0, single buffered']
    %14 = vsyncpa [#allocation3], 0
    %15 = vsyncpa [#allocation6], 0
    %16 = vsyncpa [#allocation4], 0
    // Predicated region
    $region2: #{tpu_custom_call.1} parent=1 // pred_check
      _
    $region3: #{tpu_custom_call.1} parent=1 // pred_check_branch
      %18 = sbr.rel (0) target = $region5
    $region4: #{tpu_custom_call.1} parent=1 // pred_region
      %s20 = ssub.s32 256, 256
      %21 = vsyncadd [#allocation3], %s20
      %s22 = sshll.u32 [#allocation2], 4
      %s23 = int_to_ptr.vmem [resolvable:$true] %s22
      %28 = dma.hbm_to_vmem [thread:$0]  %s0, 256, %s23, [#allocation3], 128, 128, 8
    $region5: #{tpu_custom_call.1} parent=1 // pred_fallthru
      _
    // Predicated region
    $region6: #{tpu_custom_call.1} parent=1 // pred_check
      _
    $region7: #{tpu_custom_call.1} parent=1 // pred_check_branch
      %30 = sbr.rel (0) target = $region9
    $region8: #{tpu_custom_call.1} parent=1 // pred_region
      %s32 = ssub.s32 256, 256
      %33 = vsyncadd [#allocation6], %s32
      %s34 = sshll.u32 [#allocation5], 4
      %s35 = int_to_ptr.vmem [resolvable:$true] %s34
      %40 = dma.hbm_to_vmem [thread:$0]  %s1, 256, %s35, [#allocation6], 64, 64, 4
    $region9: #{tpu_custom_call.1} parent=1 // pred_fallthru
      _
    // Predicated region
    $region10: #{tpu_custom_call.1} parent=1 // pred_check
      _
    $region11: #{tpu_custom_call.1} parent=1 // pred_check_branch
      %42 = sbr.rel (0) target = $region13
    $region12: #{tpu_custom_call.1} parent=1 // pred_region
      _
    $region13: #{tpu_custom_call.1} parent=1 // pred_fallthru
      _
    // Predicated region
    $region14: #{tpu_custom_call.1} parent=1 // pred_check
      _
    $region15: #{tpu_custom_call.1} parent=1 // pred_check_branch
      %44 = sbr.rel (0) target = $region17
    $region16: #{tpu_custom_call.1} parent=1 // pred_region
      %s46 = ssub.s32 256, 256
      %47 = vsyncadd [#allocation6], %s46
      %s48 = sshll.u32 [#allocation7], 4
      %s49 = int_to_ptr.vmem [resolvable:$true] %s48
      %54 = dma.hbm_to_vmem [thread:$0]  %s3, 256, %s49, [#allocation6], 64, 64, 4
    $region17: #{tpu_custom_call.1} parent=1 // pred_fallthru
      _
    // Predicated region
    $region18: #{tpu_custom_call.1} parent=1 // pred_check
      _
    $region19: #{tpu_custom_call.1} parent=1 // pred_check_branch
      %56 = sbr.rel (0) target = $region21
    $region20: #{tpu_custom_call.1} parent=1 // pred_region
      _
    $region21: #{tpu_custom_call.1} parent=1 // pred_fallthru
      _
    // Predicated region
    $region22: #{tpu_custom_call.1} parent=1 // pred_check
      _
    $region23: #{tpu_custom_call.1} parent=1 // pred_check_branch
      %58 = sbr.rel (0) target = $region25
    $region24: #{tpu_custom_call.1} parent=1 // pred_region
      _
    $region25: #{tpu_custom_call.1} parent=1 // pred_fallthru
      _
    // Predicated region
    $region26: #{tpu_custom_call.1} parent=1 // pred_check
      _
    $region27: #{tpu_custom_call.1} parent=1 // pred_check_branch
      %60 = sbr.rel (0) target = $region29
    $region28: #{tpu_custom_call.1} parent=1 // pred_region
      _
    $region29: #{tpu_custom_call.1} parent=1 // pred_fallthru
      _
    // Predicated region
    $region30: #{tpu_custom_call.1} parent=1 // pred_check
      _
    $region31: #{tpu_custom_call.1} parent=1 // pred_check_branch
      %62 = sbr.rel (0) target = $region33
    $region32: #{tpu_custom_call.1} parent=1 // pred_region
      _
    $region33: #{tpu_custom_call.1} parent=1 // pred_fallthru
      _
    // Predicated region
    $region34: #{tpu_custom_call.1} parent=1 // pred_check
      _
    $region35: #{tpu_custom_call.1} parent=1 // pred_check_branch
      %64 = sbr.rel (0) target = $region37
    $region36: #{tpu_custom_call.1} parent=1 // pred_region
      _
    $region37: #{tpu_custom_call.1} parent=1 // pred_fallthru
      _
    // Predicated region
    $region38: #{tpu_custom_call.1} parent=1 // pred_check
      _
    $region39: #{tpu_custom_call.1} parent=1 // pred_check_branch
      %66 = sbr.rel (0) target = $region41
    $region40: #{tpu_custom_call.1} parent=1 // pred_region
      %67 = dma.done [#allocation3], 256
    $region41: #{tpu_custom_call.1} parent=1 // pred_fallthru
      _
    // Predicated region
    $region42: #{tpu_custom_call.1} parent=1 // pred_check
      _
    $region43: #{tpu_custom_call.1} parent=1 // pred_check_branch
      %69 = sbr.rel (0) target = $region45
    $region44: #{tpu_custom_call.1} parent=1 // pred_region
      %70 = dma.done [#allocation6], 256
    $region45: #{tpu_custom_call.1} parent=1 // pred_fallthru
      _
    // Predicated region
    $region46: #{tpu_custom_call.1} parent=1 // pred_check
      _
    $region47: #{tpu_custom_call.1} parent=1 // pred_check_branch
      %72 = sbr.rel (0) target = $region49
    $region48: #{tpu_custom_call.1} parent=1 // pred_region
      %73 = dma.done [#allocation6], 256
    $region49: #{tpu_custom_call.1} parent=1 // pred_fallthru
      _
    %v75 = vld [vmem:[#allocation2] sm:$0xff]
    %v76 = vld [vmem:[#allocation2 + $0x8] sm:$0xff]
    %v77 = vpack.c.bf16 %v76, %v75
    %v78 = vld [vmem:[#allocation5] sm:$0xf]
    %v79 = vld [vmem:[#allocation5 + $0x4] sm:$0xf]
    %v80 = vld [vmem:[#allocation5 + $0x8] sm:$0xf]
    %v81 = vld [vmem:[#allocation5 + $0xc] sm:$0xf]
    %v82 = vld [vmem:[%s2] sm:$0x1]
    %v84 = vlaneseq
    %v85 = vshrl.u32 %v84, 7
    %v86 = vsub.s32 0, %v85
    %v87 = vrot.slane %v82, %v86
    %v93 = vunpack.c.l.b16 %v78
    %v94 = vunpack.c.l.b16 %v79
    %v95 = vunpack.c.l.b16 %v80
    %v96 = vunpack.c.l.b16 %v81
    %v97 = vpack.c.b16 %v94, %v93
    %v98 = vpack.c.b16 %v96, %v95
    %vm101 = vcmask 261120
    %v103 = vsel %vm101, %v77, 0
    %105 = vmatprep.subr.bf16.mxu0 0
    %106 = vmatpush1.bf16.msra.mxu0 0
    %107 = vmatprep.subr.bf16.mxu0 0
    %108 = vmatpush1.bf16.msra.mxu0 0
    %109 = vmatprep.subr.bf16.mxu0 0
    %110 = vmatpush1.bf16.msra.mxu0 0
    %111 = vmatprep.subr.bf16.mxu0 0
    %112 = vmatpush1.bf16.msra.mxu0 0
    %113 = vmatprep.subr.bf16.mxu0 0
    %114 = vmatpush1.bf16.msra.mxu0 0
    %115 = vmatprep.subr.bf16.mxu0 0
    %116 = vmatpush1.bf16.msra.mxu0 0
    %117 = vmatprep.subr.bf16.mxu0 0
    %118 = vmatpush1.bf16.msra.mxu0 %v98
    %119 = vmatprep.subr.bf16.mxu0 0
    %120 = vmatpush1.bf16.msra.mxu0 %v97
    %121 = vmatprep.subr.bf16.mxu0 0
    %122 = vmatpush2.bf16.msra.mxu0 0
    %123 = vmatprep.subr.bf16.mxu0 0
    %124 = vmatpush2.bf16.msra.mxu0 0
    %125 = vmatprep.subr.bf16.mxu0 0
    %126 = vmatpush2.bf16.msra.mxu0 0
    %127 = vmatprep.subr.bf16.mxu0 0
    %128 = vmatpush2.bf16.msra.mxu0 0
    %129 = vmatprep.subr.bf16.mxu0 0
    %130 = vmatpush2.bf16.msra.mxu0 0
    %131 = vmatprep.subr.bf16.mxu0 0
    %132 = vmatpush2.bf16.msra.mxu0 0
    %133 = vmatprep.subr.bf16.mxu0 0
    %134 = vmatpush2.bf16.msra.mxu0 0
    %135 = vmatprep.subr.bf16.mxu0 0
    %136 = vmatpush2.bf16.msra.mxu0 0
    %137 = vmatprep.mubr.bf16.mxu0 0
    %138 = vmatmul.mubr.bf16.gmra.mxu0 %v103
    %v139 = vpop.f32.mrf.mxu0
    %v140 = vadd.f32 %v87, %v139
    %v141 = vpop.f32.mrf.mxu0
    %v142 = vpop.f32.mrf.mxu0
    %v143 = vadd.f32 %v87, %v142
    %v144 = vpop.f32.mrf.mxu0
    %145 = vdwg.mxu0
    %146 = vxpose.xlu0.b32.start [1/16] %v140, 128
    %147 = vxpose.xlu0.b32.cont [2/16] 0.0, 128
    %148 = vxpose.xlu0.b32.cont [3/16] 0.0, 128
    %149 = vxpose.xlu0.b32.cont [4/16] 0.0, 128
    %150 = vxpose.xlu0.b32.cont [5/16] 0.0, 128
    %151 = vxpose.xlu0.b32.cont [6/16] 0.0, 128
    %152 = vxpose.xlu0.b32.cont [7/16] 0.0, 128
    %153 = vxpose.xlu0.b32.cont [8/16] 0.0, 128
    %154 = vxpose.xlu0.b32.cont [9/16] 0.0, 128
    %155 = vxpose.xlu0.b32.cont [10/16] 0.0, 128
    %156 = vxpose.xlu0.b32.cont [11/16] 0.0, 128
    %157 = vxpose.xlu0.b32.cont [12/16] 0.0, 128
    %158 = vxpose.xlu0.b32.cont [13/16] 0.0, 128
    %159 = vxpose.xlu0.b32.cont [14/16] 0.0, 128
    %160 = vxpose.xlu0.b32.cont [15/16] 0.0, 128
    %161 = vxpose.xlu0.b32.end [16/16] 0.0, 128
    %v162 = vpop.trf.xlu0
    %v163 = vpop.trf.xlu0
    %v164 = vpop.trf.xlu0
    %v165 = vpop.trf.xlu0
    %v166 = vpop.trf.xlu0
    %v167 = vpop.trf.xlu0
    %v168 = vpop.trf.xlu0
    %v169 = vpop.trf.xlu0
    %v170 = vpop.trf.xlu0
    %v171 = vpop.trf.xlu0
    %v172 = vpop.trf.xlu0
    %v173 = vpop.trf.xlu0
    %v174 = vpop.trf.xlu0
    %v175 = vpop.trf.xlu0
    %v176 = vpop.trf.xlu0
    %v177 = vpop.trf.xlu0
    %178 = vxpose.xlu0.b32.start [1/16] %v143, 128
    %179 = vxpose.xlu0.b32.cont [2/16] 0.0, 128
    %180 = vxpose.xlu0.b32.cont [3/16] 0.0, 128
    %181 = vxpose.xlu0.b32.cont [4/16] 0.0, 128
    %182 = vxpose.xlu0.b32.cont [5/16] 0.0, 128
    %183 = vxpose.xlu0.b32.cont [6/16] 0.0, 128
    %184 = vxpose.xlu0.b32.cont [7/16] 0.0, 128
    %185 = vxpose.xlu0.b32.cont [8/16] 0.0, 128
    %186 = vxpose.xlu0.b32.cont [9/16] 0.0, 128
    %187 = vxpose.xlu0.b32.cont [10/16] 0.0, 128
    %188 = vxpose.xlu0.b32.cont [11/16] 0.0, 128
    %189 = vxpose.xlu0.b32.cont [12/16] 0.0, 128
    %190 = vxpose.xlu0.b32.cont [13/16] 0.0, 128
    %191 = vxpose.xlu0.b32.cont [14/16] 0.0, 128
    %192 = vxpose.xlu0.b32.cont [15/16] 0.0, 128
    %193 = vxpose.xlu0.b32.end [16/16] 0.0, 128
    %v194 = vpop.trf.xlu0
    %v195 = vpop.trf.xlu0
    %v196 = vpop.trf.xlu0
    %v197 = vpop.trf.xlu0
    %v198 = vpop.trf.xlu0
    %v199 = vpop.trf.xlu0
    %v200 = vpop.trf.xlu0
    %v201 = vpop.trf.xlu0
    %v202 = vpop.trf.xlu0
    %v203 = vpop.trf.xlu0
    %v204 = vpop.trf.xlu0
    %v205 = vpop.trf.xlu0
    %v206 = vpop.trf.xlu0
    %v207 = vpop.trf.xlu0
    %v208 = vpop.trf.xlu0
    %v209 = vpop.trf.xlu0
    %210 = vxpose.xlu0.b32.start [1/16] %v162, 128
    %211 = vxpose.xlu0.b32.cont [2/16] 0.0, 128
    %212 = vxpose.xlu0.b32.cont [3/16] 0.0, 128
    %213 = vxpose.xlu0.b32.cont [4/16] 0.0, 128
    %214 = vxpose.xlu0.b32.cont [5/16] 0.0, 128
    %215 = vxpose.xlu0.b32.cont [6/16] 0.0, 128
    %216 = vxpose.xlu0.b32.cont [7/16] 0.0, 128
    %217 = vxpose.xlu0.b32.cont [8/16] 0.0, 128
    %218 = vxpose.xlu0.b32.cont [9/16] 0.0, 128
    %219 = vxpose.xlu0.b32.cont [10/16] 0.0, 128
    %220 = vxpose.xlu0.b32.cont [11/16] 0.0, 128
    %221 = vxpose.xlu0.b32.cont [12/16] 0.0, 128
    %222 = vxpose.xlu0.b32.cont [13/16] 0.0, 128
    %223 = vxpose.xlu0.b32.cont [14/16] 0.0, 128
    %224 = vxpose.xlu0.b32.cont [15/16] 0.0, 128
    %225 = vxpose.xlu0.b32.end [16/16] 0.0, 128
    %v226 = vpop.trf.xlu0
    %v227 = vpop.trf.xlu0
    %v228 = vpop.trf.xlu0
    %v229 = vpop.trf.xlu0
    %v230 = vpop.trf.xlu0
    %v231 = vpop.trf.xlu0
    %v232 = vpop.trf.xlu0
    %v233 = vpop.trf.xlu0
    %v234 = vpop.trf.xlu0
    %v235 = vpop.trf.xlu0
    %v236 = vpop.trf.xlu0
    %v237 = vpop.trf.xlu0
    %v238 = vpop.trf.xlu0
    %v239 = vpop.trf.xlu0
    %v240 = vpop.trf.xlu0
    %v241 = vpop.trf.xlu0
    %242 = vxpose.xlu0.b32.start [1/16] %v163, 128
    %243 = vxpose.xlu0.b32.cont [2/16] 0.0, 128
    %244 = vxpose.xlu0.b32.cont [3/16] 0.0, 128
    %245 = vxpose.xlu0.b32.cont [4/16] 0.0, 128
    %246 = vxpose.xlu0.b32.cont [5/16] 0.0, 128
    %247 = vxpose.xlu0.b32.cont [6/16] 0.0, 128
    %248 = vxpose.xlu0.b32.cont [7/16] 0.0, 128
    %249 = vxpose.xlu0.b32.cont [8/16] 0.0, 128
    %250 = vxpose.xlu0.b32.cont [9/16] 0.0, 128
    %251 = vxpose.xlu0.b32.cont [10/16] 0.0, 128
    %252 = vxpose.xlu0.b32.cont [11/16] 0.0, 128
    %253 = vxpose.xlu0.b32.cont [12/16] 0.0, 128
    %254 = vxpose.xlu0.b32.cont [13/16] 0.0, 128
    %255 = vxpose.xlu0.b32.cont [14/16] 0.0, 128
    %256 = vxpose.xlu0.b32.cont [15/16] 0.0, 128
    %257 = vxpose.xlu0.b32.end [16/16] 0.0, 128
    %v258 = vpop.trf.xlu0
    %v259 = vpop.trf.xlu0
    %v260 = vpop.trf.xlu0
    %v261 = vpop.trf.xlu0
    %v262 = vpop.trf.xlu0
    %v263 = vpop.trf.xlu0
    %v264 = vpop.trf.xlu0
    %v265 = vpop.trf.xlu0
    %v266 = vpop.trf.xlu0
    %v267 = vpop.trf.xlu0
    %v268 = vpop.trf.xlu0
    %v269 = vpop.trf.xlu0
    %v270 = vpop.trf.xlu0
    %v271 = vpop.trf.xlu0
    %v272 = vpop.trf.xlu0
    %v273 = vpop.trf.xlu0
    %274 = vxpose.xlu0.b32.start [1/16] %v164, 128
    %275 = vxpose.xlu0.b32.cont [2/16] 0.0, 128
    %276 = vxpose.xlu0.b32.cont [3/16] 0.0, 128
    %277 = vxpose.xlu0.b32.cont [4/16] 0.0, 128
    %278 = vxpose.xlu0.b32.cont [5/16] 0.0, 128
    %279 = vxpose.xlu0.b32.cont [6/16] 0.0, 128
    %280 = vxpose.xlu0.b32.cont [7/16] 0.0, 128
    %281 = vxpose.xlu0.b32.cont [8/16] 0.0, 128
    %282 = vxpose.xlu0.b32.cont [9/16] 0.0, 128
    %283 = vxpose.xlu0.b32.cont [10/16] 0.0, 128
    %284 = vxpose.xlu0.b32.cont [11/16] 0.0, 128
    %285 = vxpose.xlu0.b32.cont [12/16] 0.0, 128
    %286 = vxpose.xlu0.b32.cont [13/16] 0.0, 128
    %287 = vxpose.xlu0.b32.cont [14/16] 0.0, 128
    %288 = vxpose.xlu0.b32.cont [15/16] 0.0, 128
    %289 = vxpose.xlu0.b32.end [16/16] 0.0, 128
    %v290 = vpop.trf.xlu0
    %v291 = vpop.trf.xlu0
    %v292 = vpop.trf.xlu0
    %v293 = vpop.trf.xlu0
    %v294 = vpop.trf.xlu0
    %v295 = vpop.trf.xlu0
    %v296 = vpop.trf.xlu0
    %v297 = vpop.trf.xlu0
    %v298 = vpop.trf.xlu0
    %v299 = vpop.trf.xlu0
    %v300 = vpop.trf.xlu0
    %v301 = vpop.trf.xlu0
    %v302 = vpop.trf.xlu0
    %v303 = vpop.trf.xlu0
    %v304 = vpop.trf.xlu0
    %v305 = vpop.trf.xlu0
    %306 = vxpose.xlu0.b32.start [1/16] %v165, 128
    %307 = vxpose.xlu0.b32.cont [2/16] 0.0, 128
    %308 = vxpose.xlu0.b32.cont [3/16] 0.0, 128
    %309 = vxpose.xlu0.b32.cont [4/16] 0.0, 128
    %310 = vxpose.xlu0.b32.cont [5/16] 0.0, 128
    %311 = vxpose.xlu0.b32.cont [6/16] 0.0, 128
    %312 = vxpose.xlu0.b32.cont [7/16] 0.0, 128
    %313 = vxpose.xlu0.b32.cont [8/16] 0.0, 128
    %314 = vxpose.xlu0.b32.cont [9/16] 0.0, 128
    %315 = vxpose.xlu0.b32.cont [10/16] 0.0, 128
    %316 = vxpose.xlu0.b32.cont [11/16] 0.0, 128
    %317 = vxpose.xlu0.b32.cont [12/16] 0.0, 128
    %318 = vxpose.xlu0.b32.cont [13/16] 0.0, 128
    %319 = vxpose.xlu0.b32.cont [14/16] 0.0, 128
    %320 = vxpose.xlu0.b32.cont [15/16] 0.0, 128
    %321 = vxpose.xlu0.b32.end [16/16] 0.0, 128
    %v322 = vpop.trf.xlu0
    %v323 = vpop.trf.xlu0
    %v324 = vpop.trf.xlu0
    %v325 = vpop.trf.xlu0
    %v326 = vpop.trf.xlu0
    %v327 = vpop.trf.xlu0
    %v328 = vpop.trf.xlu0
    %v329 = vpop.trf.xlu0
    %v330 = vpop.trf.xlu0
    %v331 = vpop.trf.xlu0
    %v332 = vpop.trf.xlu0
    %v333 = vpop.trf.xlu0
    %v334 = vpop.trf.xlu0
    %v335 = vpop.trf.xlu0
    %v336 = vpop.trf.xlu0
    %v337 = vpop.trf.xlu0
    %338 = vxpose.xlu0.b32.start [1/16] %v194, 128
    %339 = vxpose.xlu0.b32.cont [2/16] 0.0, 128
    %340 = vxpose.xlu0.b32.cont [3/16] 0.0, 128
    %341 = vxpose.xlu0.b32.cont [4/16] 0.0, 128
    %342 = vxpose.xlu0.b32.cont [5/16] 0.0, 128
    %343 = vxpose.xlu0.b32.cont [6/16] 0.0, 128
    %344 = vxpose.xlu0.b32.cont [7/16] 0.0, 128
    %345 = vxpose.xlu0.b32.cont [8/16] 0.0, 128
    %346 = vxpose.xlu0.b32.cont [9/16] 0.0, 128
    %347 = vxpose.xlu0.b32.cont [10/16] 0.0, 128
    %348 = vxpose.xlu0.b32.cont [11/16] 0.0, 128
    %349 = vxpose.xlu0.b32.cont [12/16] 0.0, 128
    %350 = vxpose.xlu0.b32.cont [13/16] 0.0, 128
    %351 = vxpose.xlu0.b32.cont [14/16] 0.0, 128
    %352 = vxpose.xlu0.b32.cont [15/16] 0.0, 128
    %353 = vxpose.xlu0.b32.end [16/16] 0.0, 128
    %v354 = vpop.trf.xlu0
    %v355 = vpop.trf.xlu0
    %v356 = vpop.trf.xlu0
    %v357 = vpop.trf.xlu0
    %v358 = vpop.trf.xlu0
    %v359 = vpop.trf.xlu0
    %v360 = vpop.trf.xlu0
    %v361 = vpop.trf.xlu0
    %v362 = vpop.trf.xlu0
    %v363 = vpop.trf.xlu0
    %v364 = vpop.trf.xlu0
    %v365 = vpop.trf.xlu0
    %v366 = vpop.trf.xlu0
    %v367 = vpop.trf.xlu0
    %v368 = vpop.trf.xlu0
    %v369 = vpop.trf.xlu0
    %370 = vxpose.xlu0.b32.start [1/16] %v195, 128
    %371 = vxpose.xlu0.b32.cont [2/16] 0.0, 128
    %372 = vxpose.xlu0.b32.cont [3/16] 0.0, 128
    %373 = vxpose.xlu0.b32.cont [4/16] 0.0, 128
    %374 = vxpose.xlu0.b32.cont [5/16] 0.0, 128
    %375 = vxpose.xlu0.b32.cont [6/16] 0.0, 128
    %376 = vxpose.xlu0.b32.cont [7/16] 0.0, 128
    %377 = vxpose.xlu0.b32.cont [8/16] 0.0, 128
    %378 = vxpose.xlu0.b32.cont [9/16] 0.0, 128
    %379 = vxpose.xlu0.b32.cont [10/16] 0.0, 128
    %380 = vxpose.xlu0.b32.cont [11/16] 0.0, 128
    %381 = vxpose.xlu0.b32.cont [12/16] 0.0, 128
    %382 = vxpose.xlu0.b32.cont [13/16] 0.0, 128
    %383 = vxpose.xlu0.b32.cont [14/16] 0.0, 128
    %384 = vxpose.xlu0.b32.cont [15/16] 0.0, 128
    %385 = vxpose.xlu0.b32.end [16/16] 0.0, 128
    %v386 = vpop.trf.xlu0
    %v387 = vpop.trf.xlu0
    %v388 = vpop.trf.xlu0
    %v389 = vpop.trf.xlu0
    %v390 = vpop.trf.xlu0
    %v391 = vpop.trf.xlu0
    %v392 = vpop.trf.xlu0
    %v393 = vpop.trf.xlu0
    %v394 = vpop.trf.xlu0
    %v395 = vpop.trf.xlu0
    %v396 = vpop.trf.xlu0
    %v397 = vpop.trf.xlu0
    %v398 = vpop.trf.xlu0
    %v399 = vpop.trf.xlu0
    %v400 = vpop.trf.xlu0
    %v401 = vpop.trf.xlu0
    %402 = vxpose.xlu0.b32.start [1/16] %v196, 128
    %403 = vxpose.xlu0.b32.cont [2/16] 0.0, 128
    %404 = vxpose.xlu0.b32.cont [3/16] 0.0, 128
    %405 = vxpose.xlu0.b32.cont [4/16] 0.0, 128
    %406 = vxpose.xlu0.b32.cont [5/16] 0.0, 128
    %407 = vxpose.xlu0.b32.cont [6/16] 0.0, 128
    %408 = vxpose.xlu0.b32.cont [7/16] 0.0, 128
    %409 = vxpose.xlu0.b32.cont [8/16] 0.0, 128
    %410 = vxpose.xlu0.b32.cont [9/16] 0.0, 128
    %411 = vxpose.xlu0.b32.cont [10/16] 0.0, 128
    %412 = vxpose.xlu0.b32.cont [11/16] 0.0, 128
    %413 = vxpose.xlu0.b32.cont [12/16] 0.0, 128
    %414 = vxpose.xlu0.b32.cont [13/16] 0.0, 128
    %415 = vxpose.xlu0.b32.cont [14/16] 0.0, 128
    %416 = vxpose.xlu0.b32.cont [15/16] 0.0, 128
    %417 = vxpose.xlu0.b32.end [16/16] 0.0, 128
    %v418 = vpop.trf.xlu0
    %v419 = vpop.trf.xlu0
    %v420 = vpop.trf.xlu0
    %v421 = vpop.trf.xlu0
    %v422 = vpop.trf.xlu0
    %v423 = vpop.trf.xlu0
    %v424 = vpop.trf.xlu0
    %v425 = vpop.trf.xlu0
    %v426 = vpop.trf.xlu0
    %v427 = vpop.trf.xlu0
    %v428 = vpop.trf.xlu0
    %v429 = vpop.trf.xlu0
    %v430 = vpop.trf.xlu0
    %v431 = vpop.trf.xlu0
    %v432 = vpop.trf.xlu0
    %v433 = vpop.trf.xlu0
    %434 = vxpose.xlu0.b32.start [1/16] %v197, 128
    %435 = vxpose.xlu0.b32.cont [2/16] 0.0, 128
    %436 = vxpose.xlu0.b32.cont [3/16] 0.0, 128
    %437 = vxpose.xlu0.b32.cont [4/16] 0.0, 128
    %438 = vxpose.xlu0.b32.cont [5/16] 0.0, 128
    %439 = vxpose.xlu0.b32.cont [6/16] 0.0, 128
    %440 = vxpose.xlu0.b32.cont [7/16] 0.0, 128
    %441 = vxpose.xlu0.b32.cont [8/16] 0.0, 128
    %442 = vxpose.xlu0.b32.cont [9/16] 0.0, 128
    %443 = vxpose.xlu0.b32.cont [10/16] 0.0, 128
    %444 = vxpose.xlu0.b32.cont [11/16] 0.0, 128
    %445 = vxpose.xlu0.b32.cont [12/16] 0.0, 128
    %446 = vxpose.xlu0.b32.cont [13/16] 0.0, 128
    %447 = vxpose.xlu0.b32.cont [14/16] 0.0, 128
    %448 = vxpose.xlu0.b32.cont [15/16] 0.0, 128
    %449 = vxpose.xlu0.b32.end [16/16] 0.0, 128
    %v450 = vpop.trf.xlu0
    %v451 = vpop.trf.xlu0
    %v452 = vpop.trf.xlu0
    %v453 = vpop.trf.xlu0
    %v454 = vpop.trf.xlu0
    %v455 = vpop.trf.xlu0
    %v456 = vpop.trf.xlu0
    %v457 = vpop.trf.xlu0
    %v458 = vpop.trf.xlu0
    %v459 = vpop.trf.xlu0
    %v460 = vpop.trf.xlu0
    %v461 = vpop.trf.xlu0
    %v462 = vpop.trf.xlu0
    %v463 = vpop.trf.xlu0
    %v464 = vpop.trf.xlu0
    %v465 = vpop.trf.xlu0
    %v466 = vpack.c.bf16 %v226, %v226
    %v467 = vpack.c.bf16 %v258, %v258
    %v468 = vpack.c.bf16 %v290, %v290
    %v469 = vpack.c.bf16 %v322, %v322
    %v470 = vpack.c.bf16 %v354, %v354
    %v471 = vpack.c.bf16 %v386, %v386
    %v472 = vpack.c.bf16 %v418, %v418
    %v473 = vpack.c.bf16 %v450, %v450
    %v474 = vpack.c.bf16 %v166, %v166
    %v475 = vpack.c.bf16 %v167, %v167
    %v476 = vpack.c.bf16 %v168, %v168
    %v477 = vpack.c.bf16 %v169, %v169
    %v478 = vpack.c.bf16 %v198, %v198
    %v479 = vpack.c.bf16 %v199, %v199
    %v480 = vpack.c.bf16 %v200, %v200
    %v481 = vpack.c.bf16 %v201, %v201
    %v482 = vpack.c.bf16 %v170, %v170
    %v483 = vpack.c.bf16 %v171, %v171
    %v484 = vpack.c.bf16 %v172, %v172
    %v485 = vpack.c.bf16 %v173, %v173
    %v486 = vpack.c.bf16 %v202, %v202
    %v487 = vpack.c.bf16 %v203, %v203
    %v488 = vpack.c.bf16 %v204, %v204
    %v489 = vpack.c.bf16 %v205, %v205
    %vm490 = vcmask 64512
    %v492 = vsel %vm490, %v466, 0
    %vm494 = vcmask 1043456
    %v496 = vsel %vm494, %v474, 0
    %498 = vmatprep.subr.bf16.mxu0 0
    %499 = vmatpush1.bf16.msra.mxu0 0
    %500 = vmatprep.subr.bf16.mxu0 0
    %501 = vmatpush1.bf16.msra.mxu0 0
    %502 = vmatprep.subr.bf16.mxu0 0
    %503 = vmatpush1.bf16.msra.mxu0 0
    %504 = vmatprep.subr.bf16.mxu0 0
    %505 = vmatpush1.bf16.msra.mxu0 0
    %506 = vmatprep.subr.bf16.mxu0 0
    %507 = vmatpush1.bf16.msra.mxu0 0
    %508 = vmatprep.subr.bf16.mxu0 0
    %509 = vmatpush1.bf16.msra.mxu0 0
    %510 = vmatprep.subr.bf16.mxu0 0
    %511 = vmatpush1.bf16.msra.mxu0 0
    %512 = vmatprep.subr.bf16.mxu0 0
    %513 = vmatpush1.bf16.msra.mxu0 %v496
    %514 = vmatprep.subr.bf16.mxu0 0
    %515 = vmatpush2.bf16.msra.mxu0 0
    %516 = vmatprep.subr.bf16.mxu0 0
    %517 = vmatpush2.bf16.msra.mxu0 0
    %518 = vmatprep.subr.bf16.mxu0 0
    %519 = vmatpush2.bf16.msra.mxu0 0
    %520 = vmatprep.subr.bf16.mxu0 0
    %521 = vmatpush2.bf16.msra.mxu0 0
    %522 = vmatprep.subr.bf16.mxu0 0
    %523 = vmatpush2.bf16.msra.mxu0 0
    %524 = vmatprep.subr.bf16.mxu0 0
    %525 = vmatpush2.bf16.msra.mxu0 0
    %526 = vmatprep.subr.bf16.mxu0 0
    %527 = vmatpush2.bf16.msra.mxu0 0
    %528 = vmatprep.subr.bf16.mxu0 0
    %529 = vmatpush2.bf16.msra.mxu0 0
    %530 = vmatprep.mubr.bf16.mxu0 0
    %531 = vmatmul.mubr.bf16.gmra.mxu0 %v492
    %v532 = vpop.f32.mrf.mxu0
    %v533 = vadd.f32 0.0, %v532
    %v534 = vpop.f32.mrf.mxu0
    %v535 = vpop.f32.mrf.mxu0
    %v536 = vpop.f32.mrf.mxu0
    %537 = vdwg.mxu0
    %v539 = vsel %vm490, %v467, 0
    %v542 = vsel %vm494, %v475, 0
    %544 = vmatprep.subr.bf16.mxu0 0
    %545 = vmatpush1.bf16.msra.mxu0 0
    %546 = vmatprep.subr.bf16.mxu0 0
    %547 = vmatpush1.bf16.msra.mxu0 0
    %548 = vmatprep.subr.bf16.mxu0 0
    %549 = vmatpush1.bf16.msra.mxu0 0
    %550 = vmatprep.subr.bf16.mxu0 0
    %551 = vmatpush1.bf16.msra.mxu0 0
    %552 = vmatprep.subr.bf16.mxu0 0
    %553 = vmatpush1.bf16.msra.mxu0 0
    %554 = vmatprep.subr.bf16.mxu0 0
    %555 = vmatpush1.bf16.msra.mxu0 0
    %556 = vmatprep.subr.bf16.mxu0 0
    %557 = vmatpush1.bf16.msra.mxu0 0
    %558 = vmatprep.subr.bf16.mxu0 0
    %559 = vmatpush1.bf16.msra.mxu0 %v542
    %560 = vmatprep.subr.bf16.mxu0 0
    %561 = vmatpush2.bf16.msra.mxu0 0
    %562 = vmatprep.subr.bf16.mxu0 0
    %563 = vmatpush2.bf16.msra.mxu0 0
    %564 = vmatprep.subr.bf16.mxu0 0
    %565 = vmatpush2.bf16.msra.mxu0 0
    %566 = vmatprep.subr.bf16.mxu0 0
    %567 = vmatpush2.bf16.msra.mxu0 0
    %568 = vmatprep.subr.bf16.mxu0 0
    %569 = vmatpush2.bf16.msra.mxu0 0
    %570 = vmatprep.subr.bf16.mxu0 0
    %571 = vmatpush2.bf16.msra.mxu0 0
    %572 = vmatprep.subr.bf16.mxu0 0
    %573 = vmatpush2.bf16.msra.mxu0 0
    %574 = vmatprep.subr.bf16.mxu0 0
    %575 = vmatpush2.bf16.msra.mxu0 0
    %576 = vmatprep.mubr.bf16.mxu0 0
    %577 = vmatmul.mubr.bf16.gmra.mxu0 %v539
    %v578 = vpop.f32.mrf.mxu0
    %v579 = vadd.f32 0.0, %v578
    %v580 = vpop.f32.mrf.mxu0
    %v581 = vpop.f32.mrf.mxu0
    %v582 = vpop.f32.mrf.mxu0
    %583 = vdwg.mxu0
    %v585 = vsel %vm490, %v468, 0
    %v588 = vsel %vm494, %v476, 0
    %590 = vmatprep.subr.bf16.mxu0 0
    %591 = vmatpush1.bf16.msra.mxu0 0
    %592 = vmatprep.subr.bf16.mxu0 0
    %593 = vmatpush1.bf16.msra.mxu0 0
    %594 = vmatprep.subr.bf16.mxu0 0
    %595 = vmatpush1.bf16.msra.mxu0 0
    %596 = vmatprep.subr.bf16.mxu0 0
    %597 = vmatpush1.bf16.msra.mxu0 0
    %598 = vmatprep.subr.bf16.mxu0 0
    %599 = vmatpush1.bf16.msra.mxu0 0
    %600 = vmatprep.subr.bf16.mxu0 0
    %601 = vmatpush1.bf16.msra.mxu0 0
    %602 = vmatprep.subr.bf16.mxu0 0
    %603 = vmatpush1.bf16.msra.mxu0 0
    %604 = vmatprep.subr.bf16.mxu0 0
    %605 = vmatpush1.bf16.msra.mxu0 %v588
    %606 = vmatprep.subr.bf16.mxu0 0
    %607 = vmatpush2.bf16.msra.mxu0 0
    %608 = vmatprep.subr.bf16.mxu0 0
    %609 = vmatpush2.bf16.msra.mxu0 0
    %610 = vmatprep.subr.bf16.mxu0 0
    %611 = vmatpush2.bf16.msra.mxu0 0
    %612 = vmatprep.subr.bf16.mxu0 0
    %613 = vmatpush2.bf16.msra.mxu0 0
    %614 = vmatprep.subr.bf16.mxu0 0
    %615 = vmatpush2.bf16.msra.mxu0 0
    %616 = vmatprep.subr.bf16.mxu0 0
    %617 = vmatpush2.bf16.msra.mxu0 0
    %618 = vmatprep.subr.bf16.mxu0 0
    %619 = vmatpush2.bf16.msra.mxu0 0
    %620 = vmatprep.subr.bf16.mxu0 0
    %621 = vmatpush2.bf16.msra.mxu0 0
    %622 = vmatprep.mubr.bf16.mxu0 0
    %623 = vmatmul.mubr.bf16.gmra.mxu0 %v585
    %v624 = vpop.f32.mrf.mxu0
    %v625 = vadd.f32 0.0, %v624
    %v626 = vpop.f32.mrf.mxu0
    %v627 = vpop.f32.mrf.mxu0
    %v628 = vpop.f32.mrf.mxu0
    %629 = vdwg.mxu0
    %v631 = vsel %vm490, %v469, 0
    %v634 = vsel %vm494, %v477, 0
    %636 = vmatprep.subr.bf16.mxu0 0
    %637 = vmatpush1.bf16.msra.mxu0 0
    %638 = vmatprep.subr.bf16.mxu0 0
    %639 = vmatpush1.bf16.msra.mxu0 0
    %640 = vmatprep.subr.bf16.mxu0 0
    %641 = vmatpush1.bf16.msra.mxu0 0
    %642 = vmatprep.subr.bf16.mxu0 0
    %643 = vmatpush1.bf16.msra.mxu0 0
    %644 = vmatprep.subr.bf16.mxu0 0
    %645 = vmatpush1.bf16.msra.mxu0 0
    %646 = vmatprep.subr.bf16.mxu0 0
    %647 = vmatpush1.bf16.msra.mxu0 0
    %648 = vmatprep.subr.bf16.mxu0 0
    %649 = vmatpush1.bf16.msra.mxu0 0
    %650 = vmatprep.subr.bf16.mxu0 0
    %651 = vmatpush1.bf16.msra.mxu0 %v634
    %652 = vmatprep.subr.bf16.mxu0 0
    %653 = vmatpush2.bf16.msra.mxu0 0
    %654 = vmatprep.subr.bf16.mxu0 0
    %655 = vmatpush2.bf16.msra.mxu0 0
    %656 = vmatprep.subr.bf16.mxu0 0
    %657 = vmatpush2.bf16.msra.mxu0 0
    %658 = vmatprep.subr.bf16.mxu0 0
    %659 = vmatpush2.bf16.msra.mxu0 0
    %660 = vmatprep.subr.bf16.mxu0 0
    %661 = vmatpush2.bf16.msra.mxu0 0
    %662 = vmatprep.subr.bf16.mxu0 0
    %663 = vmatpush2.bf16.msra.mxu0 0
    %664 = vmatprep.subr.bf16.mxu0 0
    %665 = vmatpush2.bf16.msra.mxu0 0
    %666 = vmatprep.subr.bf16.mxu0 0
    %667 = vmatpush2.bf16.msra.mxu0 0
    %668 = vmatprep.mubr.bf16.mxu0 0
    %669 = vmatmul.mubr.bf16.gmra.mxu0 %v631
    %v670 = vpop.f32.mrf.mxu0
    %v671 = vadd.f32 0.0, %v670
    %v672 = vpop.f32.mrf.mxu0
    %v673 = vpop.f32.mrf.mxu0
    %v674 = vpop.f32.mrf.mxu0
    %675 = vdwg.mxu0
    %v677 = vsel %vm490, %v470, 0
    %v680 = vsel %vm494, %v478, 0
    %682 = vmatprep.subr.bf16.mxu0 0
    %683 = vmatpush1.bf16.msra.mxu0 0
    %684 = vmatprep.subr.bf16.mxu0 0
    %685 = vmatpush1.bf16.msra.mxu0 0
    %686 = vmatprep.subr.bf16.mxu0 0
    %687 = vmatpush1.bf16.msra.mxu0 0
    %688 = vmatprep.subr.bf16.mxu0 0
    %689 = vmatpush1.bf16.msra.mxu0 0
    %690 = vmatprep.subr.bf16.mxu0 0
    %691 = vmatpush1.bf16.msra.mxu0 0
    %692 = vmatprep.subr.bf16.mxu0 0
    %693 = vmatpush1.bf16.msra.mxu0 0
    %694 = vmatprep.subr.bf16.mxu0 0
    %695 = vmatpush1.bf16.msra.mxu0 0
    %696 = vmatprep.subr.bf16.mxu0 0
    %697 = vmatpush1.bf16.msra.mxu0 %v680
    %698 = vmatprep.subr.bf16.mxu0 0
    %699 = vmatpush2.bf16.msra.mxu0 0
    %700 = vmatprep.subr.bf16.mxu0 0
    %701 = vmatpush2.bf16.msra.mxu0 0
    %702 = vmatprep.subr.bf16.mxu0 0
    %703 = vmatpush2.bf16.msra.mxu0 0
    %704 = vmatprep.subr.bf16.mxu0 0
    %705 = vmatpush2.bf16.msra.mxu0 0
    %706 = vmatprep.subr.bf16.mxu0 0
    %707 = vmatpush2.bf16.msra.mxu0 0
    %708 = vmatprep.subr.bf16.mxu0 0
    %709 = vmatpush2.bf16.msra.mxu0 0
    %710 = vmatprep.subr.bf16.mxu0 0
    %711 = vmatpush2.bf16.msra.mxu0 0
    %712 = vmatprep.subr.bf16.mxu0 0
    %713 = vmatpush2.bf16.msra.mxu0 0
    %714 = vmatprep.mubr.bf16.mxu0 0
    %715 = vmatmul.mubr.bf16.gmra.mxu0 %v677
    %v716 = vpop.f32.mrf.mxu0
    %v717 = vadd.f32 0.0, %v716
    %v718 = vpop.f32.mrf.mxu0
    %v719 = vpop.f32.mrf.mxu0
    %v720 = vpop.f32.mrf.mxu0
    %721 = vdwg.mxu0
    %v723 = vsel %vm490, %v471, 0
    %v726 = vsel %vm494, %v479, 0
    %728 = vmatprep.subr.bf16.mxu0 0
    %729 = vmatpush1.bf16.msra.mxu0 0
    %730 = vmatprep.subr.bf16.mxu0 0
    %731 = vmatpush1.bf16.msra.mxu0 0
    %732 = vmatprep.subr.bf16.mxu0 0
    %733 = vmatpush1.bf16.msra.mxu0 0
    %734 = vmatprep.subr.bf16.mxu0 0
    %735 = vmatpush1.bf16.msra.mxu0 0
    %736 = vmatprep.subr.bf16.mxu0 0
    %737 = vmatpush1.bf16.msra.mxu0 0
    %738 = vmatprep.subr.bf16.mxu0 0
    %739 = vmatpush1.bf16.msra.mxu0 0
    %740 = vmatprep.subr.bf16.mxu0 0
    %741 = vmatpush1.bf16.msra.mxu0 0
    %742 = vmatprep.subr.bf16.mxu0 0
    %743 = vmatpush1.bf16.msra.mxu0 %v726
    %744 = vmatprep.subr.bf16.mxu0 0
    %745 = vmatpush2.bf16.msra.mxu0 0
    %746 = vmatprep.subr.bf16.mxu0 0
    %747 = vmatpush2.bf16.msra.mxu0 0
    %748 = vmatprep.subr.bf16.mxu0 0
    %749 = vmatpush2.bf16.msra.mxu0 0
    %750 = vmatprep.subr.bf16.mxu0 0
    %751 = vmatpush2.bf16.msra.mxu0 0
    %752 = vmatprep.subr.bf16.mxu0 0
    %753 = vmatpush2.bf16.msra.mxu0 0
    %754 = vmatprep.subr.bf16.mxu0 0
    %755 = vmatpush2.bf16.msra.mxu0 0
    %756 = vmatprep.subr.bf16.mxu0 0
    %757 = vmatpush2.bf16.msra.mxu0 0
    %758 = vmatprep.subr.bf16.mxu0 0
    %759 = vmatpush2.bf16.msra.mxu0 0
    %760 = vmatprep.mubr.bf16.mxu0 0
    %761 = vmatmul.mubr.bf16.gmra.mxu0 %v723
    %v762 = vpop.f32.mrf.mxu0
    %v763 = vadd.f32 0.0, %v762
    %v764 = vpop.f32.mrf.mxu0
    %v765 = vpop.f32.mrf.mxu0
    %v766 = vpop.f32.mrf.mxu0
    %767 = vdwg.mxu0
    %v769 = vsel %vm490, %v472, 0
    %v772 = vsel %vm494, %v480, 0
    %774 = vmatprep.subr.bf16.mxu0 0
    %775 = vmatpush1.bf16.msra.mxu0 0
    %776 = vmatprep.subr.bf16.mxu0 0
    %777 = vmatpush1.bf16.msra.mxu0 0
    %778 = vmatprep.subr.bf16.mxu0 0
    %779 = vmatpush1.bf16.msra.mxu0 0
    %780 = vmatprep.subr.bf16.mxu0 0
    %781 = vmatpush1.bf16.msra.mxu0 0
    %782 = vmatprep.subr.bf16.mxu0 0
    %783 = vmatpush1.bf16.msra.mxu0 0
    %784 = vmatprep.subr.bf16.mxu0 0
    %785 = vmatpush1.bf16.msra.mxu0 0
    %786 = vmatprep.subr.bf16.mxu0 0
    %787 = vmatpush1.bf16.msra.mxu0 0
    %788 = vmatprep.subr.bf16.mxu0 0
    %789 = vmatpush1.bf16.msra.mxu0 %v772
    %790 = vmatprep.subr.bf16.mxu0 0
    %791 = vmatpush2.bf16.msra.mxu0 0
    %792 = vmatprep.subr.bf16.mxu0 0
    %793 = vmatpush2.bf16.msra.mxu0 0
    %794 = vmatprep.subr.bf16.mxu0 0
    %795 = vmatpush2.bf16.msra.mxu0 0
    %796 = vmatprep.subr.bf16.mxu0 0
    %797 = vmatpush2.bf16.msra.mxu0 0
    %798 = vmatprep.subr.bf16.mxu0 0
    %799 = vmatpush2.bf16.msra.mxu0 0
    %800 = vmatprep.subr.bf16.mxu0 0
    %801 = vmatpush2.bf16.msra.mxu0 0
    %802 = vmatprep.subr.bf16.mxu0 0
    %803 = vmatpush2.bf16.msra.mxu0 0
    %804 = vmatprep.subr.bf16.mxu0 0
    %805 = vmatpush2.bf16.msra.mxu0 0
    %806 = vmatprep.mubr.bf16.mxu0 0
    %807 = vmatmul.mubr.bf16.gmra.mxu0 %v769
    %v808 = vpop.f32.mrf.mxu0
    %v809 = vadd.f32 0.0, %v808
    %v810 = vpop.f32.mrf.mxu0
    %v811 = vpop.f32.mrf.mxu0
    %v812 = vpop.f32.mrf.mxu0
    %813 = vdwg.mxu0
    %v815 = vsel %vm490, %v473, 0
    %v818 = vsel %vm494, %v481, 0
    %820 = vmatprep.subr.bf16.mxu0 0
    %821 = vmatpush1.bf16.msra.mxu0 0
    %822 = vmatprep.subr.bf16.mxu0 0
    %823 = vmatpush1.bf16.msra.mxu0 0
    %824 = vmatprep.subr.bf16.mxu0 0
    %825 = vmatpush1.bf16.msra.mxu0 0
    %826 = vmatprep.subr.bf16.mxu0 0
    %827 = vmatpush1.bf16.msra.mxu0 0
    %828 = vmatprep.subr.bf16.mxu0 0
    %829 = vmatpush1.bf16.msra.mxu0 0
    %830 = vmatprep.subr.bf16.mxu0 0
    %831 = vmatpush1.bf16.msra.mxu0 0
    %832 = vmatprep.subr.bf16.mxu0 0
    %833 = vmatpush1.bf16.msra.mxu0 0
    %834 = vmatprep.subr.bf16.mxu0 0
    %835 = vmatpush1.bf16.msra.mxu0 %v818
    %836 = vmatprep.subr.bf16.mxu0 0
    %837 = vmatpush2.bf16.msra.mxu0 0
    %838 = vmatprep.subr.bf16.mxu0 0
    %839 = vmatpush2.bf16.msra.mxu0 0
    %840 = vmatprep.subr.bf16.mxu0 0
    %841 = vmatpush2.bf16.msra.mxu0 0
    %842 = vmatprep.subr.bf16.mxu0 0
    %843 = vmatpush2.bf16.msra.mxu0 0
    %844 = vmatprep.subr.bf16.mxu0 0
    %845 = vmatpush2.bf16.msra.mxu0 0
    %846 = vmatprep.subr.bf16.mxu0 0
    %847 = vmatpush2.bf16.msra.mxu0 0
    %848 = vmatprep.subr.bf16.mxu0 0
    %849 = vmatpush2.bf16.msra.mxu0 0
    %850 = vmatprep.subr.bf16.mxu0 0
    %851 = vmatpush2.bf16.msra.mxu0 0
    %852 = vmatprep.mubr.bf16.mxu0 0
    %853 = vmatmul.mubr.bf16.gmra.mxu0 %v815
    %v854 = vpop.f32.mrf.mxu0
    %v855 = vadd.f32 0.0, %v854
    %v856 = vpop.f32.mrf.mxu0
    %v857 = vpop.f32.mrf.mxu0
    %v858 = vpop.f32.mrf.mxu0
    %859 = vdwg.mxu0
    %v860 = vsel %vm490, %v533, -inf
    %861 = vmax.xlane.f32.xlu0 %v860
    %v862 = vpop.xlane.xlu0 %861
    %v863 = vsel %vm490, %v579, -inf
    %864 = vmax.xlane.f32.xlu0 %v863
    %v865 = vpop.xlane.xlu0 %864
    %v866 = vsel %vm490, %v625, -inf
    %867 = vmax.xlane.f32.xlu0 %v866
    %v868 = vpop.xlane.xlu0 %867
    %v869 = vsel %vm490, %v671, -inf
    %870 = vmax.xlane.f32.xlu0 %v869
    %v871 = vpop.xlane.xlu0 %870
    %v872 = vsel %vm490, %v717, -inf
    %873 = vmax.xlane.f32.xlu0 %v872
    %v874 = vpop.xlane.xlu0 %873
    %v875 = vsel %vm490, %v763, -inf
    %876 = vmax.xlane.f32.xlu0 %v875
    %v877 = vpop.xlane.xlu0 %876
    %v878 = vsel %vm490, %v809, -inf
    %879 = vmax.xlane.f32.xlu0 %v878
    %v880 = vpop.xlane.xlu0 %879
    %v881 = vsel %vm490, %v855, -inf
    %882 = vmax.xlane.f32.xlu0 %v881
    %v883 = vpop.xlane.xlu0 %882
    %v884 = vsub.f32 %v533, %v862
    %v885 = vsub.f32 %v579, %v865
    %v886 = vsub.f32 %v625, %v868
    %v887 = vsub.f32 %v671, %v871
    %v888 = vsub.f32 %v717, %v874
    %v889 = vsub.f32 %v763, %v877
    %v890 = vsub.f32 %v809, %v880
    %v891 = vsub.f32 %v855, %v883
    %v892 = vmul.f32 %v884, 1.442695
    %v893 = vpow.pop %v892
    %v894 = vmul.f32 %v885, 1.442695
    %v895 = vpow.pop %v894
    %v896 = vmul.f32 %v886, 1.442695
    %v897 = vpow.pop %v896
    %v898 = vmul.f32 %v887, 1.442695
    %v899 = vpow.pop %v898
    %v900 = vmul.f32 %v888, 1.442695
    %v901 = vpow.pop %v900
    %v902 = vmul.f32 %v889, 1.442695
    %v903 = vpow.pop %v902
    %v904 = vmul.f32 %v890, 1.442695
    %v905 = vpow.pop %v904
    %v906 = vmul.f32 %v891, 1.442695
    %v907 = vpow.pop %v906
    %v908 = vsel %vm490, %v893, 0.0
    %909 = vadd.xlane.f32.xlu0 %v908
    %v910 = vpop.xlane.xlu0 %909
    %v911 = vsel %vm490, %v895, 0.0
    %912 = vadd.xlane.f32.xlu0 %v911
    %v913 = vpop.xlane.xlu0 %912
    %v914 = vsel %vm490, %v897, 0.0
    %915 = vadd.xlane.f32.xlu0 %v914
    %v916 = vpop.xlane.xlu0 %915
    %v917 = vsel %vm490, %v899, 0.0
    %918 = vadd.xlane.f32.xlu0 %v917
    %v919 = vpop.xlane.xlu0 %918
    %v920 = vsel %vm490, %v901, 0.0
    %921 = vadd.xlane.f32.xlu0 %v920
    %v922 = vpop.xlane.xlu0 %921
    %v923 = vsel %vm490, %v903, 0.0
    %924 = vadd.xlane.f32.xlu0 %v923
    %v925 = vpop.xlane.xlu0 %924
    %v926 = vsel %vm490, %v905, 0.0
    %927 = vadd.xlane.f32.xlu0 %v926
    %v928 = vpop.xlane.xlu0 %927
    %v929 = vsel %vm490, %v907, 0.0
    %930 = vadd.xlane.f32.xlu0 %v929
    %v931 = vpop.xlane.xlu0 %930
    %v932 = vrcp.pop %v910
    %v933 = vrcp.pop %v913
    %v934 = vrcp.pop %v916
    %v935 = vrcp.pop %v919
    %v936 = vrcp.pop %v922
    %v937 = vrcp.pop %v925
    %v938 = vrcp.pop %v928
    %v939 = vrcp.pop %v931
    %v940 = vmul.f32 %v893, %v932
    %v941 = vmul.f32 %v895, %v933
    %v942 = vmul.f32 %v897, %v934
    %v943 = vmul.f32 %v899, %v935
    %v944 = vmul.f32 %v901, %v936
    %v945 = vmul.f32 %v903, %v937
    %v946 = vmul.f32 %v905, %v938
    %v947 = vmul.f32 %v907, %v939
    %v948 = vpack.c.bf16 %v940, %v940
    %v949 = vpack.c.bf16 %v941, %v941
    %v950 = vpack.c.bf16 %v942, %v942
    %v951 = vpack.c.bf16 %v943, %v943
    %v952 = vpack.c.bf16 %v944, %v944
    %v953 = vpack.c.bf16 %v945, %v945
    %v954 = vpack.c.bf16 %v946, %v946
    %v955 = vpack.c.bf16 %v947, %v947
    %v957 = vsel %vm490, %v482, 0
    %v960 = vsel %vm490, %v948, 0
    %962 = vmatprep.subr.bf16.mxu0 0
    %963 = vmatpush1.bf16.xpose.msra.mxu0 0
    %964 = vmatprep.subr.bf16.mxu0 0
    %965 = vmatpush1.bf16.xpose.msra.mxu0 0
    %966 = vmatprep.subr.bf16.mxu0 0
    %967 = vmatpush1.bf16.xpose.msra.mxu0 0
    %968 = vmatprep.subr.bf16.mxu0 0
    %969 = vmatpush1.bf16.xpose.msra.mxu0 0
    %970 = vmatprep.subr.bf16.mxu0 0
    %971 = vmatpush1.bf16.xpose.msra.mxu0 0
    %972 = vmatprep.subr.bf16.mxu0 0
    %973 = vmatpush1.bf16.xpose.msra.mxu0 0
    %974 = vmatprep.subr.bf16.mxu0 0
    %975 = vmatpush1.bf16.xpose.msra.mxu0 0
    %976 = vmatprep.subr.bf16.mxu0 0
    %977 = vmatpush1.bf16.xpose.msra.mxu0 %v960
    %978 = vmatprep.subr.bf16.mxu0 0
    %979 = vmatpush2.bf16.xpose.msra.mxu0 0
    %980 = vmatprep.subr.bf16.mxu0 0
    %981 = vmatpush2.bf16.xpose.msra.mxu0 0
    %982 = vmatprep.subr.bf16.mxu0 0
    %983 = vmatpush2.bf16.xpose.msra.mxu0 0
    %984 = vmatprep.subr.bf16.mxu0 0
    %985 = vmatpush2.bf16.xpose.msra.mxu0 0
    %986 = vmatprep.subr.bf16.mxu0 0
    %987 = vmatpush2.bf16.xpose.msra.mxu0 0
    %988 = vmatprep.subr.bf16.mxu0 0
    %989 = vmatpush2.bf16.xpose.msra.mxu0 0
    %990 = vmatprep.subr.bf16.mxu0 0
    %991 = vmatpush2.bf16.xpose.msra.mxu0 0
    %992 = vmatprep.subr.bf16.mxu0 0
    %993 = vmatpush2.bf16.xpose.msra.mxu0 0
    %994 = vmatprep.mubr.bf16.mxu0 0
    %995 = vmatmul.mubr.bf16.gmra.mxu0 %v957
    %v996 = vpop.f32.mrf.mxu0
    %v997 = vadd.f32 0.0, %v996
    %v998 = vpop.f32.mrf.mxu0
    %v999 = vpop.f32.mrf.mxu0
    %v1000 = vpop.f32.mrf.mxu0
    %1001 = vdwg.mxu0
    %v1003 = vsel %vm490, %v483, 0
    %v1006 = vsel %vm490, %v949, 0
    %1008 = vmatprep.subr.bf16.mxu0 0
    %1009 = vmatpush1.bf16.xpose.msra.mxu0 0
    %1010 = vmatprep.subr.bf16.mxu0 0
    %1011 = vmatpush1.bf16.xpose.msra.mxu0 0
    %1012 = vmatprep.subr.bf16.mxu0 0
    %1013 = vmatpush1.bf16.xpose.msra.mxu0 0
    %1014 = vmatprep.subr.bf16.mxu0 0
    %1015 = vmatpush1.bf16.xpose.msra.mxu0 0
    %1016 = vmatprep.subr.bf16.mxu0 0
    %1017 = vmatpush1.bf16.xpose.msra.mxu0 0
    %1018 = vmatprep.subr.bf16.mxu0 0
    %1019 = vmatpush1.bf16.xpose.msra.mxu0 0
    %1020 = vmatprep.subr.bf16.mxu0 0
    %1021 = vmatpush1.bf16.xpose.msra.mxu0 0
    %1022 = vmatprep.subr.bf16.mxu0 0
    %1023 = vmatpush1.bf16.xpose.msra.mxu0 %v1006
    %1024 = vmatprep.subr.bf16.mxu0 0
    %1025 = vmatpush2.bf16.xpose.msra.mxu0 0
    %1026 = vmatprep.subr.bf16.mxu0 0
    %1027 = vmatpush2.bf16.xpose.msra.mxu0 0
    %1028 = vmatprep.subr.bf16.mxu0 0
    %1029 = vmatpush2.bf16.xpose.msra.mxu0 0
    %1030 = vmatprep.subr.bf16.mxu0 0
    %1031 = vmatpush2.bf16.xpose.msra.mxu0 0
    %1032 = vmatprep.subr.bf16.mxu0 0
    %1033 = vmatpush2.bf16.xpose.msra.mxu0 0
    %1034 = vmatprep.subr.bf16.mxu0 0
    %1035 = vmatpush2.bf16.xpose.msra.mxu0 0
    %1036 = vmatprep.subr.bf16.mxu0 0
    %1037 = vmatpush2.bf16.xpose.msra.mxu0 0
    %1038 = vmatprep.subr.bf16.mxu0 0
    %1039 = vmatpush2.bf16.xpose.msra.mxu0 0
    %1040 = vmatprep.mubr.bf16.mxu0 0
    %1041 = vmatmul.mubr.bf16.gmra.mxu0 %v1003
    %v1042 = vpop.f32.mrf.mxu0
    %v1043 = vadd.f32 0.0, %v1042
    %v1044 = vpop.f32.mrf.mxu0
    %v1045 = vpop.f32.mrf.mxu0
    %v1046 = vpop.f32.mrf.mxu0
    %1047 = vdwg.mxu0
    %v1049 = vsel %vm490, %v484, 0
    %v1052 = vsel %vm490, %v950, 0
    %1054 = vmatprep.subr.bf16.mxu0 0
    %1055 = vmatpush1.bf16.xpose.msra.mxu0 0
    %1056 = vmatprep.subr.bf16.mxu0 0
    %1057 = vmatpush1.bf16.xpose.msra.mxu0 0
    %1058 = vmatprep.subr.bf16.mxu0 0
    %1059 = vmatpush1.bf16.xpose.msra.mxu0 0
    %1060 = vmatprep.subr.bf16.mxu0 0
    %1061 = vmatpush1.bf16.xpose.msra.mxu0 0
    %1062 = vmatprep.subr.bf16.mxu0 0
    %1063 = vmatpush1.bf16.xpose.msra.mxu0 0
    %1064 = vmatprep.subr.bf16.mxu0 0
    %1065 = vmatpush1.bf16.xpose.msra.mxu0 0
    %1066 = vmatprep.subr.bf16.mxu0 0
    %1067 = vmatpush1.bf16.xpose.msra.mxu0 0
    %1068 = vmatprep.subr.bf16.mxu0 0
    %1069 = vmatpush1.bf16.xpose.msra.mxu0 %v1052
    %1070 = vmatprep.subr.bf16.mxu0 0
    %1071 = vmatpush2.bf16.xpose.msra.mxu0 0
    %1072 = vmatprep.subr.bf16.mxu0 0
    %1073 = vmatpush2.bf16.xpose.msra.mxu0 0
    %1074 = vmatprep.subr.bf16.mxu0 0
    %1075 = vmatpush2.bf16.xpose.msra.mxu0 0
    %1076 = vmatprep.subr.bf16.mxu0 0
    %1077 = vmatpush2.bf16.xpose.msra.mxu0 0
    %1078 = vmatprep.subr.bf16.mxu0 0
    %1079 = vmatpush2.bf16.xpose.msra.mxu0 0
    %1080 = vmatprep.subr.bf16.mxu0 0
    %1081 = vmatpush2.bf16.xpose.msra.mxu0 0
    %1082 = vmatprep.subr.bf16.mxu0 0
    %1083 = vmatpush2.bf16.xpose.msra.mxu0 0
    %1084 = vmatprep.subr.bf16.mxu0 0
    %1085 = vmatpush2.bf16.xpose.msra.mxu0 0
    %1086 = vmatprep.mubr.bf16.mxu0 0
    %1087 = vmatmul.mubr.bf16.gmra.mxu0 %v1049
    %v1088 = vpop.f32.mrf.mxu0
    %v1089 = vadd.f32 0.0, %v1088
    %v1090 = vpop.f32.mrf.mxu0
    %v1091 = vpop.f32.mrf.mxu0
    %v1092 = vpop.f32.mrf.mxu0
    %1093 = vdwg.mxu0
    %v1095 = vsel %vm490, %v485, 0
    %v1098 = vsel %vm490, %v951, 0
    %1100 = vmatprep.subr.bf16.mxu0 0
    %1101 = vmatpush1.bf16.xpose.msra.mxu0 0
    %1102 = vmatprep.subr.bf16.mxu0 0
    %1103 = vmatpush1.bf16.xpose.msra.mxu0 0
    %1104 = vmatprep.subr.bf16.mxu0 0
    %1105 = vmatpush1.bf16.xpose.msra.mxu0 0
    %1106 = vmatprep.subr.bf16.mxu0 0
    %1107 = vmatpush1.bf16.xpose.msra.mxu0 0
    %1108 = vmatprep.subr.bf16.mxu0 0
    %1109 = vmatpush1.bf16.xpose.msra.mxu0 0
    %1110 = vmatprep.subr.bf16.mxu0 0
    %1111 = vmatpush1.bf16.xpose.msra.mxu0 0
    %1112 = vmatprep.subr.bf16.mxu0 0
    %1113 = vmatpush1.bf16.xpose.msra.mxu0 0
    %1114 = vmatprep.subr.bf16.mxu0 0
    %1115 = vmatpush1.bf16.xpose.msra.mxu0 %v1098
    %1116 = vmatprep.subr.bf16.mxu0 0
    %1117 = vmatpush2.bf16.xpose.msra.mxu0 0
    %1118 = vmatprep.subr.bf16.mxu0 0
    %1119 = vmatpush2.bf16.xpose.msra.mxu0 0
    %1120 = vmatprep.subr.bf16.mxu0 0
    %1121 = vmatpush2.bf16.xpose.msra.mxu0 0
    %1122 = vmatprep.subr.bf16.mxu0 0
    %1123 = vmatpush2.bf16.xpose.msra.mxu0 0
    %1124 = vmatprep.subr.bf16.mxu0 0
    %1125 = vmatpush2.bf16.xpose.msra.mxu0 0
    %1126 = vmatprep.subr.bf16.mxu0 0
    %1127 = vmatpush2.bf16.xpose.msra.mxu0 0
    %1128 = vmatprep.subr.bf16.mxu0 0
    %1129 = vmatpush2.bf16.xpose.msra.mxu0 0
    %1130 = vmatprep.subr.bf16.mxu0 0
    %1131 = vmatpush2.bf16.xpose.msra.mxu0 0
    %1132 = vmatprep.mubr.bf16.mxu0 0
    %1133 = vmatmul.mubr.bf16.gmra.mxu0 %v1095
    %v1134 = vpop.f32.mrf.mxu0
    %v1135 = vadd.f32 0.0, %v1134
    %v1136 = vpop.f32.mrf.mxu0
    %v1137 = vpop.f32.mrf.mxu0
    %v1138 = vpop.f32.mrf.mxu0
    %1139 = vdwg.mxu0
    %v1141 = vsel %vm490, %v486, 0
    %v1144 = vsel %vm490, %v952, 0
    %1146 = vmatprep.subr.bf16.mxu0 0
    %1147 = vmatpush1.bf16.xpose.msra.mxu0 0
    %1148 = vmatprep.subr.bf16.mxu0 0
    %1149 = vmatpush1.bf16.xpose.msra.mxu0 0
    %1150 = vmatprep.subr.bf16.mxu0 0
    %1151 = vmatpush1.bf16.xpose.msra.mxu0 0
    %1152 = vmatprep.subr.bf16.mxu0 0
    %1153 = vmatpush1.bf16.xpose.msra.mxu0 0
    %1154 = vmatprep.subr.bf16.mxu0 0
    %1155 = vmatpush1.bf16.xpose.msra.mxu0 0
    %1156 = vmatprep.subr.bf16.mxu0 0
    %1157 = vmatpush1.bf16.xpose.msra.mxu0 0
    %1158 = vmatprep.subr.bf16.mxu0 0
    %1159 = vmatpush1.bf16.xpose.msra.mxu0 0
    %1160 = vmatprep.subr.bf16.mxu0 0
    %1161 = vmatpush1.bf16.xpose.msra.mxu0 %v1144
    %1162 = vmatprep.subr.bf16.mxu0 0
    %1163 = vmatpush2.bf16.xpose.msra.mxu0 0
    %1164 = vmatprep.subr.bf16.mxu0 0
    %1165 = vmatpush2.bf16.xpose.msra.mxu0 0
    %1166 = vmatprep.subr.bf16.mxu0 0
    %1167 = vmatpush2.bf16.xpose.msra.mxu0 0
    %1168 = vmatprep.subr.bf16.mxu0 0
    %1169 = vmatpush2.bf16.xpose.msra.mxu0 0
    %1170 = vmatprep.subr.bf16.mxu0 0
    %1171 = vmatpush2.bf16.xpose.msra.mxu0 0
    %1172 = vmatprep.subr.bf16.mxu0 0
    %1173 = vmatpush2.bf16.xpose.msra.mxu0 0
    %1174 = vmatprep.subr.bf16.mxu0 0
    %1175 = vmatpush2.bf16.xpose.msra.mxu0 0
    %1176 = vmatprep.subr.bf16.mxu0 0
    %1177 = vmatpush2.bf16.xpose.msra.mxu0 0
    %1178 = vmatprep.mubr.bf16.mxu0 0
    %1179 = vmatmul.mubr.bf16.gmra.mxu0 %v1141
    %v1180 = vpop.f32.mrf.mxu0
    %v1181 = vadd.f32 0.0, %v1180
    %v1182 = vpop.f32.mrf.mxu0
    %v1183 = vpop.f32.mrf.mxu0
    %v1184 = vpop.f32.mrf.mxu0
    %1185 = vdwg.mxu0
    %v1187 = vsel %vm490, %v487, 0
    %v1190 = vsel %vm490, %v953, 0
    %1192 = vmatprep.subr.bf16.mxu0 0
    %1193 = vmatpush1.bf16.xpose.msra.mxu0 0
    %1194 = vmatprep.subr.bf16.mxu0 0
    %1195 = vmatpush1.bf16.xpose.msra.mxu0 0
    %1196 = vmatprep.subr.bf16.mxu0 0
    %1197 = vmatpush1.bf16.xpose.msra.mxu0 0
    %1198 = vmatprep.subr.bf16.mxu0 0
    %1199 = vmatpush1.bf16.xpose.msra.mxu0 0
    %1200 = vmatprep.subr.bf16.mxu0 0
    %1201 = vmatpush1.bf16.xpose.msra.mxu0 0
    %1202 = vmatprep.subr.bf16.mxu0 0
    %1203 = vmatpush1.bf16.xpose.msra.mxu0 0
    %1204 = vmatprep.subr.bf16.mxu0 0
    %1205 = vmatpush1.bf16.xpose.msra.mxu0 0
    %1206 = vmatprep.subr.bf16.mxu0 0
    %1207 = vmatpush1.bf16.xpose.msra.mxu0 %v1190
    %1208 = vmatprep.subr.bf16.mxu0 0
    %1209 = vmatpush2.bf16.xpose.msra.mxu0 0
    %1210 = vmatprep.subr.bf16.mxu0 0
    %1211 = vmatpush2.bf16.xpose.msra.mxu0 0
    %1212 = vmatprep.subr.bf16.mxu0 0
    %1213 = vmatpush2.bf16.xpose.msra.mxu0 0
    %1214 = vmatprep.subr.bf16.mxu0 0
    %1215 = vmatpush2.bf16.xpose.msra.mxu0 0
    %1216 = vmatprep.subr.bf16.mxu0 0
    %1217 = vmatpush2.bf16.xpose.msra.mxu0 0
    %1218 = vmatprep.subr.bf16.mxu0 0
    %1219 = vmatpush2.bf16.xpose.msra.mxu0 0
    %1220 = vmatprep.subr.bf16.mxu0 0
    %1221 = vmatpush2.bf16.xpose.msra.mxu0 0
    %1222 = vmatprep.subr.bf16.mxu0 0
    %1223 = vmatpush2.bf16.xpose.msra.mxu0 0
    %1224 = vmatprep.mubr.bf16.mxu0 0
    %1225 = vmatmul.mubr.bf16.gmra.mxu0 %v1187
    %v1226 = vpop.f32.mrf.mxu0
    %v1227 = vadd.f32 0.0, %v1226
    %v1228 = vpop.f32.mrf.mxu0
    %v1229 = vpop.f32.mrf.mxu0
    %v1230 = vpop.f32.mrf.mxu0
    %1231 = vdwg.mxu0
    %v1233 = vsel %vm490, %v488, 0
    %v1236 = vsel %vm490, %v954, 0
    %1238 = vmatprep.subr.bf16.mxu0 0
    %1239 = vmatpush1.bf16.xpose.msra.mxu0 0
    %1240 = vmatprep.subr.bf16.mxu0 0
    %1241 = vmatpush1.bf16.xpose.msra.mxu0 0
    %1242 = vmatprep.subr.bf16.mxu0 0
    %1243 = vmatpush1.bf16.xpose.msra.mxu0 0
    %1244 = vmatprep.subr.bf16.mxu0 0
    %1245 = vmatpush1.bf16.xpose.msra.mxu0 0
    %1246 = vmatprep.subr.bf16.mxu0 0
    %1247 = vmatpush1.bf16.xpose.msra.mxu0 0
    %1248 = vmatprep.subr.bf16.mxu0 0
    %1249 = vmatpush1.bf16.xpose.msra.mxu0 0
    %1250 = vmatprep.subr.bf16.mxu0 0
    %1251 = vmatpush1.bf16.xpose.msra.mxu0 0
    %1252 = vmatprep.subr.bf16.mxu0 0
    %1253 = vmatpush1.bf16.xpose.msra.mxu0 %v1236
    %1254 = vmatprep.subr.bf16.mxu0 0
    %1255 = vmatpush2.bf16.xpose.msra.mxu0 0
    %1256 = vmatprep.subr.bf16.mxu0 0
    %1257 = vmatpush2.bf16.xpose.msra.mxu0 0
    %1258 = vmatprep.subr.bf16.mxu0 0
    %1259 = vmatpush2.bf16.xpose.msra.mxu0 0
    %1260 = vmatprep.subr.bf16.mxu0 0
    %1261 = vmatpush2.bf16.xpose.msra.mxu0 0
    %1262 = vmatprep.subr.bf16.mxu0 0
    %1263 = vmatpush2.bf16.xpose.msra.mxu0 0
    %1264 = vmatprep.subr.bf16.mxu0 0
    %1265 = vmatpush2.bf16.xpose.msra.mxu0 0
    %1266 = vmatprep.subr.bf16.mxu0 0
    %1267 = vmatpush2.bf16.xpose.msra.mxu0 0
    %1268 = vmatprep.subr.bf16.mxu0 0
    %1269 = vmatpush2.bf16.xpose.msra.mxu0 0
    %1270 = vmatprep.mubr.bf16.mxu0 0
    %1271 = vmatmul.mubr.bf16.gmra.mxu0 %v1233
    %v1272 = vpop.f32.mrf.mxu0
    %v1273 = vadd.f32 0.0, %v1272
    %v1274 = vpop.f32.mrf.mxu0
    %v1275 = vpop.f32.mrf.mxu0
    %v1276 = vpop.f32.mrf.mxu0
    %1277 = vdwg.mxu0
    %v1279 = vsel %vm490, %v489, 0
    %v1282 = vsel %vm490, %v955, 0
    %1284 = vmatprep.subr.bf16.mxu0 0
    %1285 = vmatpush1.bf16.xpose.msra.mxu0 0
    %1286 = vmatprep.subr.bf16.mxu0 0
    %1287 = vmatpush1.bf16.xpose.msra.mxu0 0
    %1288 = vmatprep.subr.bf16.mxu0 0
    %1289 = vmatpush1.bf16.xpose.msra.mxu0 0
    %1290 = vmatprep.subr.bf16.mxu0 0
    %1291 = vmatpush1.bf16.xpose.msra.mxu0 0
    %1292 = vmatprep.subr.bf16.mxu0 0
    %1293 = vmatpush1.bf16.xpose.msra.mxu0 0
    %1294 = vmatprep.subr.bf16.mxu0 0
    %1295 = vmatpush1.bf16.xpose.msra.mxu0 0
    %1296 = vmatprep.subr.bf16.mxu0 0
    %1297 = vmatpush1.bf16.xpose.msra.mxu0 0
    %1298 = vmatprep.subr.bf16.mxu0 0
    %1299 = vmatpush1.bf16.xpose.msra.mxu0 %v1282
    %1300 = vmatprep.subr.bf16.mxu0 0
    %1301 = vmatpush2.bf16.xpose.msra.mxu0 0
    %1302 = vmatprep.subr.bf16.mxu0 0
    %1303 = vmatpush2.bf16.xpose.msra.mxu0 0
    %1304 = vmatprep.subr.bf16.mxu0 0
    %1305 = vmatpush2.bf16.xpose.msra.mxu0 0
    %1306 = vmatprep.subr.bf16.mxu0 0
    %1307 = vmatpush2.bf16.xpose.msra.mxu0 0
    %1308 = vmatprep.subr.bf16.mxu0 0
    %1309 = vmatpush2.bf16.xpose.msra.mxu0 0
    %1310 = vmatprep.subr.bf16.mxu0 0
    %1311 = vmatpush2.bf16.xpose.msra.mxu0 0
    %1312 = vmatprep.subr.bf16.mxu0 0
    %1313 = vmatpush2.bf16.xpose.msra.mxu0 0
    %1314 = vmatprep.subr.bf16.mxu0 0
    %1315 = vmatpush2.bf16.xpose.msra.mxu0 0
    %1316 = vmatprep.mubr.bf16.mxu0 0
    %1317 = vmatmul.mubr.bf16.gmra.mxu0 %v1279
    %v1318 = vpop.f32.mrf.mxu0
    %v1319 = vadd.f32 0.0, %v1318
    %v1320 = vpop.f32.mrf.mxu0
    %v1321 = vpop.f32.mrf.mxu0
    %v1322 = vpop.f32.mrf.mxu0
    %1323 = vdwg.mxu0
    %1324 = vxpose.xlu0.b32.start [1/16] %v997, 128
    %1325 = vxpose.xlu0.b32.cont [2/16] %v1043, 128
    %1326 = vxpose.xlu0.b32.cont [3/16] %v1089, 128
    %1327 = vxpose.xlu0.b32.cont [4/16] %v1135, 128
    %1328 = vxpose.xlu0.b32.cont [5/16] 0.0, 128
    %1329 = vxpose.xlu0.b32.cont [6/16] 0.0, 128
    %1330 = vxpose.xlu0.b32.cont [7/16] 0.0, 128
    %1331 = vxpose.xlu0.b32.cont [8/16] 0.0, 128
    %1332 = vxpose.xlu0.b32.cont [9/16] 0.0, 128
    %1333 = vxpose.xlu0.b32.cont [10/16] 0.0, 128
    %1334 = vxpose.xlu0.b32.cont [11/16] 0.0, 128
    %1335 = vxpose.xlu0.b32.cont [12/16] 0.0, 128
    %1336 = vxpose.xlu0.b32.cont [13/16] 0.0, 128
    %1337 = vxpose.xlu0.b32.cont [14/16] 0.0, 128
    %1338 = vxpose.xlu0.b32.cont [15/16] 0.0, 128
    %1339 = vxpose.xlu0.b32.end [16/16] 0.0, 128
    %v1340 = vpop.trf.xlu0
    %v1341 = vpop.trf.xlu0
    %v1342 = vpop.trf.xlu0
    %v1343 = vpop.trf.xlu0
    %v1344 = vpop.trf.xlu0
    %v1345 = vpop.trf.xlu0
    %v1346 = vpop.trf.xlu0
    %v1347 = vpop.trf.xlu0
    %v1348 = vpop.trf.xlu0
    %v1349 = vpop.trf.xlu0
    %v1350 = vpop.trf.xlu0
    %v1351 = vpop.trf.xlu0
    %v1352 = vpop.trf.xlu0
    %v1353 = vpop.trf.xlu0
    %v1354 = vpop.trf.xlu0
    %v1355 = vpop.trf.xlu0
    %1356 = vxpose.xlu0.b32.start [1/16] %v1181, 128
    %1357 = vxpose.xlu0.b32.cont [2/16] %v1227, 128
    %1358 = vxpose.xlu0.b32.cont [3/16] %v1273, 128
    %1359 = vxpose.xlu0.b32.cont [4/16] %v1319, 128
    %1360 = vxpose.xlu0.b32.cont [5/16] 0.0, 128
    %1361 = vxpose.xlu0.b32.cont [6/16] 0.0, 128
    %1362 = vxpose.xlu0.b32.cont [7/16] 0.0, 128
    %1363 = vxpose.xlu0.b32.cont [8/16] 0.0, 128
    %1364 = vxpose.xlu0.b32.cont [9/16] 0.0, 128
    %1365 = vxpose.xlu0.b32.cont [10/16] 0.0, 128
    %1366 = vxpose.xlu0.b32.cont [11/16] 0.0, 128
    %1367 = vxpose.xlu0.b32.cont [12/16] 0.0, 128
    %1368 = vxpose.xlu0.b32.cont [13/16] 0.0, 128
    %1369 = vxpose.xlu0.b32.cont [14/16] 0.0, 128
    %1370 = vxpose.xlu0.b32.cont [15/16] 0.0, 128
    %1371 = vxpose.xlu0.b32.end [16/16] 0.0, 128
    %v1372 = vpop.trf.xlu0
    %v1373 = vpop.trf.xlu0
    %v1374 = vpop.trf.xlu0
    %v1375 = vpop.trf.xlu0
    %v1376 = vpop.trf.xlu0
    %v1377 = vpop.trf.xlu0
    %v1378 = vpop.trf.xlu0
    %v1379 = vpop.trf.xlu0
    %v1380 = vpop.trf.xlu0
    %v1381 = vpop.trf.xlu0
    %v1382 = vpop.trf.xlu0
    %v1383 = vpop.trf.xlu0
    %v1384 = vpop.trf.xlu0
    %v1385 = vpop.trf.xlu0
    %v1386 = vpop.trf.xlu0
    %v1387 = vpop.trf.xlu0
    %v1388 = vpack.c.bf16 %v1372, %v1340
    %v1389 = vld [vmem:[#allocation7] sm:$0xf]
    %v1390 = vld [vmem:[#allocation7 + $0x4] sm:$0xf]
    %v1391 = vld [vmem:[#allocation7 + $0x8] sm:$0xf]
    %v1392 = vld [vmem:[#allocation7 + $0xc] sm:$0xf]
    %v1393 = vld [vmem:[%s4] sm:$0x1]
    %v1395 = vlaneseq
    %v1396 = vshrl.u32 %v1395, 7
    %v1397 = vsub.s32 0, %v1396
    %v1398 = vrot.slane %v1393, %v1397
    %v1404 = vunpack.c.l.b16 %v1389
    %v1405 = vunpack.c.l.b16 %v1390
    %v1406 = vunpack.c.l.b16 %v1391
    %v1407 = vunpack.c.l.b16 %v1392
    %v1408 = vpack.c.b16 %v1405, %v1404
    %v1409 = vpack.c.b16 %v1407, %v1406
    %v1413 = vsel %vm101, %v1388, 0
    %1415 = vmatprep.subr.bf16.mxu0 0
    %1416 = vmatpush1.bf16.msra.mxu0 0
    %1417 = vmatprep.subr.bf16.mxu0 0
    %1418 = vmatpush1.bf16.msra.mxu0 0
    %1419 = vmatprep.subr.bf16.mxu0 0
    %1420 = vmatpush1.bf16.msra.mxu0 0
    %1421 = vmatprep.subr.bf16.mxu0 0
    %1422 = vmatpush1.bf16.msra.mxu0 0
    %1423 = vmatprep.subr.bf16.mxu0 0
    %1424 = vmatpush1.bf16.msra.mxu0 0
    %1425 = vmatprep.subr.bf16.mxu0 0
    %1426 = vmatpush1.bf16.msra.mxu0 0
    %1427 = vmatprep.subr.bf16.mxu0 0
    %1428 = vmatpush1.bf16.msra.mxu0 %v1409
    %1429 = vmatprep.subr.bf16.mxu0 0
    %1430 = vmatpush1.bf16.msra.mxu0 %v1408
    %1431 = vmatprep.subr.bf16.mxu0 0
    %1432 = vmatpush2.bf16.msra.mxu0 0
    %1433 = vmatprep.subr.bf16.mxu0 0
    %1434 = vmatpush2.bf16.msra.mxu0 0
    %1435 = vmatprep.subr.bf16.mxu0 0
    %1436 = vmatpush2.bf16.msra.mxu0 0
    %1437 = vmatprep.subr.bf16.mxu0 0
    %1438 = vmatpush2.bf16.msra.mxu0 0
    %1439 = vmatprep.subr.bf16.mxu0 0
    %1440 = vmatpush2.bf16.msra.mxu0 0
    %1441 = vmatprep.subr.bf16.mxu0 0
    %1442 = vmatpush2.bf16.msra.mxu0 0
    %1443 = vmatprep.subr.bf16.mxu0 0
    %1444 = vmatpush2.bf16.msra.mxu0 0
    %1445 = vmatprep.subr.bf16.mxu0 0
    %1446 = vmatpush2.bf16.msra.mxu0 0
    %1447 = vmatprep.mubr.bf16.mxu0 0
    %1448 = vmatmul.mubr.bf16.gmra.mxu0 %v1413
    %v1449 = vpop.f32.mrf.mxu0
    %v1450 = vadd.f32 %v1398, %v1449
    %v1451 = vpop.f32.mrf.mxu0
    %v1452 = vpop.f32.mrf.mxu0
    %v1453 = vadd.f32 %v1398, %v1452
    %v1454 = vpop.f32.mrf.mxu0
    %1455 = vdwg.mxu0
    %vm1456 = vcmp.gt.f32.partialorder %v1450, 0.0
    %vm1457 = vcmp.gt.f32.partialorder %v1453, 0.0
    %v1458 = vmul.f32 %v1450, 1.442695
    %v1459 = vpow.pop %v1458
    %v1460 = vmul.f32 %v1453, 1.442695
    %v1461 = vpow.pop %v1460
    %v1462 = vsub.f32 %v1459, 1.0
    %v1463 = vsub.f32 %v1461, 1.0
    %v1464 = vmul.f32 %v1462, 1.6732632
    %v1465 = vmul.f32 %v1463, 1.6732632
    %v1466 = vsel %vm1456, %v1450, %v1464
    %v1467 = vsel %vm1457, %v1453, %v1465
    %v1468 = vmul.f32 %v1466, 1.050701
    %v1469 = vmul.f32 %v1467, 1.050701
    %v1470 = vadd.f32 %v75, %v1468
    %v1471 = vadd.f32 %v76, %v1469
    %v1472 = vld [vmem:[%s5] sm:$0x1]
    %v1473 = vld [vmem:[%s6] sm:$0x1]
    %v1474 = vsel %vm101, %v1470, 0.0
    %1475 = vadd.xlane.f32.xlu0 %v1474
    %v1476 = vpop.xlane.xlu0 %1475
    %v1477 = vsel %vm101, %v1471, 0.0
    %1478 = vadd.xlane.f32.xlu0 %v1477
    %v1479 = vpop.xlane.xlu0 %1478
    %v1480 = vrcp.pop 32.0
    %v1481 = vmul.f32 %v1476, %v1480
    %v1482 = vmul.f32 %v1479, %v1480
    %v1483 = vmul.f32 %v1470, %v1470
    %v1484 = vmul.f32 %v1471, %v1471
    %v1485 = vsel %vm101, %v1483, 0.0
    %1486 = vadd.xlane.f32.xlu0 %v1485
    %v1487 = vpop.xlane.xlu0 %1486
    %v1488 = vsel %vm101, %v1484, 0.0
    %1489 = vadd.xlane.f32.xlu0 %v1488
    %v1490 = vpop.xlane.xlu0 %1489
    %v1491 = vmul.f32 %v1487, %v1480
    %v1492 = vmul.f32 %v1490, %v1480
    %v1493 = vmul.f32 %v1481, %v1481
    %v1494 = vmul.f32 %v1482, %v1482
    %v1495 = vsub.f32 %v1491, %v1493
    %v1496 = vsub.f32 %v1492, %v1494
    %v1497 = vsub.f32 %v1470, %v1481
    %v1498 = vsub.f32 %v1471, %v1482
    %v1499 = vadd.f32 %v1495, 1e-05
    %v1500 = vadd.f32 %v1496, 1e-05
    %v1501 = vrsqrt.pop %v1499
    %v1502 = vrsqrt.pop %v1500
    %v1503 = vmul.f32 %v1497, %v1501
    %v1504 = vmul.f32 %v1498, %v1502
    %v1506 = vlaneseq
    %v1507 = vshrl.u32 %v1506, 7
    %v1508 = vsub.s32 0, %v1507
    %v1509 = vrot.slane %v1472, %v1508
    %v1511 = vmul.f32 %v1503, %v1509
    %v1512 = vmul.f32 %v1504, %v1509
    %v1514 = vlaneseq
    %v1515 = vshrl.u32 %v1514, 7
    %v1516 = vsub.s32 0, %v1515
    %v1517 = vrot.slane %v1473, %v1516
    %v1519 = vadd.f32 %v1511, %v1517
    %v1520 = vadd.f32 %v1512, %v1517
    %v1521 = vld [vmem:[%s7] sm:$0x1]
    %v1522 = vld [vmem:[%s8] sm:$0x1]
    %v1523 = vsel %vm101, %v1519, 0.0
    %1524 = vadd.xlane.f32.xlu0 %v1523
    %v1525 = vpop.xlane.xlu0 %1524
    %v1526 = vsel %vm101, %v1520, 0.0
    %1527 = vadd.xlane.f32.xlu0 %v1526
    %v1528 = vpop.xlane.xlu0 %1527
    %v1529 = vmul.f32 %v1525, %v1480
    %v1530 = vmul.f32 %v1528, %v1480
    %v1531 = vmul.f32 %v1519, %v1519
    %v1532 = vmul.f32 %v1520, %v1520
    %v1533 = vsel %vm101, %v1531, 0.0
    %1534 = vadd.xlane.f32.xlu0 %v1533
    %v1535 = vpop.xlane.xlu0 %1534
    %v1536 = vsel %vm101, %v1532, 0.0
    %1537 = vadd.xlane.f32.xlu0 %v1536
    %v1538 = vpop.xlane.xlu0 %1537
    %v1539 = vmul.f32 %v1535, %v1480
    %v1540 = vmul.f32 %v1538, %v1480
    %v1541 = vmul.f32 %v1529, %v1529
    %v1542 = vmul.f32 %v1530, %v1530
    %v1543 = vsub.f32 %v1539, %v1541
    %v1544 = vsub.f32 %v1540, %v1542
    %v1545 = vsub.f32 %v1519, %v1529
    %v1546 = vsub.f32 %v1520, %v1530
    %v1547 = vadd.f32 %v1543, 1e-05
    %v1548 = vadd.f32 %v1544, 1e-05
    %v1549 = vrsqrt.pop %v1547
    %v1550 = vrsqrt.pop %v1548
    %v1551 = vmul.f32 %v1545, %v1549
    %v1552 = vmul.f32 %v1546, %v1550
    %v1554 = vlaneseq
    %v1555 = vshrl.u32 %v1554, 7
    %v1556 = vsub.s32 0, %v1555
    %v1557 = vrot.slane %v1521, %v1556
    %v1559 = vmul.f32 %v1551, %v1557
    %v1560 = vmul.f32 %v1552, %v1557
    %v1562 = vlaneseq
    %v1563 = vshrl.u32 %v1562, 7
    %v1564 = vsub.s32 0, %v1563
    %v1565 = vrot.slane %v1522, %v1564
    %v1567 = vadd.f32 %v1559, %v1565
    %v1568 = vadd.f32 %v1560, %v1565
    %1569 = vst.msk [vmem:[#allocation8] sm:$0xff] %vm101, %v1567
    %1570 = vst.msk [vmem:[#allocation8 + $0x8] sm:$0xff] %vm101, %v1568
    // Predicated region
    $region50: #{tpu_custom_call.1} parent=1 // pred_check
      _
    $region51: #{tpu_custom_call.1} parent=1 // pred_check_branch
      %1572 = sbr.rel (0) target = $region53
    $region52: #{tpu_custom_call.1} parent=1 // pred_region
      %s1574 = ssub.s32 256, 256
      %1575 = vsyncadd [#allocation4], %s1574
      %s1576 = sshll.u32 [#allocation8], 4
      %s1577 = int_to_ptr.vmem [resolvable:$true] %s1576
      %1582 = dma.vmem_to_hbm [thread:$0]  %s1577, 256, %s9, [#allocation4], 128, 128, 8
    $region53: #{tpu_custom_call.1} parent=1 // pred_fallthru
      _
    // Predicated region
    $region54: #{tpu_custom_call.1} parent=1 // pred_check
      _
    $region55: #{tpu_custom_call.1} parent=1 // pred_check_branch
      %1584 = sbr.rel (0) target = $region57
    $region56: #{tpu_custom_call.1} parent=1 // pred_region
      %1585 = dma.done [#allocation4], 256
    $region57: #{tpu_custom_call.1} parent=1 // pred_fallthru
      _
    %1586 = vsyncpa [#allocation3], 1
    %1587 = vsyncpa [#allocation6], 1
    %1588 = vsyncpa [#allocation4], 1

</llo_original>
